<compile_context>
chip_gen: v7x
topology: tpu7x:2x2x1
jax: 0.10.0
libtpu: 0.0.40
codegen_flags: <defaults>
</compile_context>

<pallas_src>
import math

import jax
import jax.numpy as jnp
from jax import lax
from jax.experimental import pallas as pl
from jax.experimental.pallas import tpu as pltpu


def _round_up(x: int, m: int) -> int:
    return ((x + m - 1) // m) * m


def _cdiv(a: int, b: int) -> int:
    return (a + b - 1) // b


def multiscale_sinousidal_encoding(x, *, num_frequencies, min_freq_exp,
                                   max_freq_exp, include_input=False,
                                   block_rows=4096, out_dtype=jnp.float32):
    """Pallas implementation of MultiScaleSinousidalEncoding.forward
    (covs=None, windows_param=None path).

    out_dtype can be set to jnp.bfloat16 when the consumer is a bf16 MLP to halve
    output HBM traffic (in-kernel math stays f32); default keeps torch's f32.
    """
    orig_shape = x.shape
    in_dim = int(orig_shape[-1])
    n = int(math.prod(orig_shape[:-1])) if len(orig_shape) > 1 else 1
    x2d = x.reshape(n, in_dim).astype(jnp.float32)

    D = in_dim
    F = int(num_frequencies)
    enc_dim = 2 * D * F
    out_dim = enc_dim + (D if include_input else 0)
    out_pad = _round_up(out_dim, 128)          # internal lane-dense compute width

    # --- constant operands (built once, outside the kernel) --------------------
    # Replication matrix, 0/1 -> exactly bf16-representable:
    #   rep[d, d*F + f] = 1, duplicated for the sin / (sin + pi/2) halves,
    #   identity columns appended for include_input, zero-padded to 128 lanes.
    eye = jnp.eye(D, dtype=jnp.float32)
    rep = jnp.repeat(eye, F, axis=1)                       # (D, D*F)
    w_parts = [rep, rep] + ([eye] if include_input else [])
    w = jnp.concatenate(w_parts, axis=1)                   # (D, out_dim)
    w = jnp.pad(w, ((0, 0), (0, out_pad - out_dim))).astype(jnp.bfloat16)

    # Per-column scale (2*pi*freqs; plain 2*pi for the identity tail) and bias
    # (pi/2 on the "cos" half).  Padded columns get scale 0 -> arg 0 -> discarded.
    freqs = 2.0 ** jnp.linspace(min_freq_exp, max_freq_exp, F, dtype=jnp.float32)
    half_scale = jnp.tile(2.0 * jnp.pi * freqs, D)         # (D*F,)
    scale_parts = [half_scale, half_scale]
    bias_parts = [jnp.zeros((D * F,), jnp.float32),
                  jnp.full((D * F,), jnp.pi / 2.0, jnp.float32)]
    if include_input:
        scale_parts.append(jnp.full((D,), 2.0 * jnp.pi, jnp.float32))
        bias_parts.append(jnp.zeros((D,), jnp.float32))
    scale = jnp.pad(jnp.concatenate(scale_parts), (0, out_pad - out_dim))
    bias = jnp.pad(jnp.concatenate(bias_parts), (0, out_pad - out_dim))
    scale = scale.reshape(1, out_pad)
    bias = bias.reshape(1, out_pad)

    # --- row tiling: budget-derived, >= 2 grid steps ---------------------------
    out_bytes = jnp.dtype(out_dtype).itemsize
    # Double-buffered VMEM per row: lane-padded input block + padded output block.
    row_bytes = 2 * (_round_up(D, 128) * 4 + out_pad * out_bytes)
    vmem_budget = 24 * 1024 * 1024
    rows_fit = max(8, (vmem_budget // row_bytes) // 8 * 8)
    rows_half = max(8, _round_up(_cdiv(n, 2), 8))          # keep >= 2 grid steps
    eff_block = max(8, min(block_rows, rows_fit, rows_half))
    grid = (_cdiv(n, eff_block),)

    def kernel(x_ref, w_ref, scale_ref, bias_ref, o_ref):
        xv = x_ref[...]                                    # (TN, D) f32
        wv = w_ref[...]                                    # (D, out_pad) bf16, 0/1
        # Exact three-limb bf16 split of x (hi + mid + lo == x in f32); each limb
        # times the 0/1 W is a single exact bf16 MXU pass -> x @ W at f32 accuracy
        # in 3 passes instead of HIGHEST's 6.
        hi = xv.astype(jnp.bfloat16)
        r = xv - hi.astype(jnp.float32)
        mid = r.astype(jnp.bfloat16)
        lo = (r - mid.astype(jnp.float32)).astype(jnp.bfloat16)
        z = jnp.dot(hi, wv, preferred_element_type=jnp.float32)
        z = z + jnp.dot(mid, wv, preferred_element_type=jnp.float32)
        z = z + jnp.dot(lo, wv, preferred_element_type=jnp.float32)
        arg = z * scale_ref[...] + bias_ref[...]           # (TN, out_pad)
        enc = jnp.sin(arg)
        if include_input:
            # Identity-tail columns carry 2*pi*x (torch appends the already-scaled
            # input); a constant lane mask selects them past the sin columns.
            col = lax.broadcasted_iota(jnp.int32, (1, out_pad), 1)
            enc = jnp.where(col < enc_dim, enc, arg)
        o_ref[...] = enc[:, :out_dim].astype(o_ref.dtype)

    cost = pl.CostEstimate(
        flops=3 * 2 * n * D * out_pad,
        transcendentals=n * out_pad,
        bytes_accessed=n * D * 4 + n * out_dim * out_bytes + (2 * D + 8) * out_pad,
    )

    enc = pl.pallas_call(
        kernel,
        out_shape=jax.ShapeDtypeStruct((n, out_dim), out_dtype),
        grid_spec=pltpu.PrefetchScalarGridSpec(
            num_scalar_prefetch=0,
            grid=grid,
            in_specs=[
                pl.BlockSpec((eff_block, D), lambda i: (i, 0)),
                pl.BlockSpec((D, out_pad), lambda i: (0, 0)),
                pl.BlockSpec((1, out_pad), lambda i: (0, 0)),
                pl.BlockSpec((1, out_pad), lambda i: (0, 0)),
            ],
            out_specs=pl.BlockSpec((eff_block, out_dim), lambda i: (i, 0)),
        ),
        compiler_params=pltpu.CompilerParams(
            dimension_semantics=("parallel",),
            vmem_limit_bytes=32 * 1024 * 1024),
        cost_estimate=cost,
    )(x2d, w, scale, bias)

    return enc.reshape(*orig_shape[:-1], out_dim)


def _reference_jax(x, *, num_frequencies, min_freq_exp, max_freq_exp,
                   include_input):
    """Plain-JAX replica of the torch forward (covs=None, windows_param=None)."""
    x = 2.0 * jnp.pi * x
    freqs = 2.0 ** jnp.linspace(min_freq_exp, max_freq_exp, num_frequencies,
                                dtype=jnp.float32)
    scaled = x[..., None] * freqs
    scaled = scaled.reshape(*scaled.shape[:-2], -1)
    enc = jnp.sin(jnp.concatenate([scaled, scaled + jnp.pi / 2.0], axis=-1))
    if include_input:
        enc = jnp.concatenate([enc, x], axis=-1)
    return enc


if __name__ == "__main__":
    key = jax.random.PRNGKey(0)

    # Module config (no learned parameters; typical NeRF positional encoding).
    in_dim = 4
    num_frequencies = 16
    min_freq_exp = 0.0
    max_freq_exp = 8.0
    include_input = True

    # Small deterministic input: batch of 2, 64 sample points, 4-D coords.
    x = jax.random.uniform(key, (2, 64, in_dim), dtype=jnp.float32,
                           minval=-1.0, maxval=1.0)

    out = multiscale_sinousidal_encoding(
        x,
        num_frequencies=num_frequencies,
        min_freq_exp=min_freq_exp,
        max_freq_exp=max_freq_exp,
        include_input=include_input,
    )
    out = jax.block_until_ready(out)

    ref = _reference_jax(
        x,
        num_frequencies=num_frequencies,
        min_freq_exp=min_freq_exp,
        max_freq_exp=max_freq_exp,
        include_input=include_input,
    )

    expected_out_dim = in_dim * num_frequencies * 2 + (in_dim if include_input else 0)
    assert out.shape == (2, 64, expected_out_dim), out.shape
    # sin arguments reach ~2*pi*2^8*|x| (~1600); a few f32 ulps of argument
    # difference (fused 2*pi*freqs constant vs the reference's two-step scaling)
    # maps to a few e-4 of output difference, so compare at 1e-3.
    err = float(jnp.max(jnp.abs(out - ref)))
    assert err < 1e-3, err

    print("KERNEL_OK")
</pallas_src>

<mosaic_0001>
module attributes {stable_mosaic.version = 11 : i64} {
  func.func @kernel(%arg0: i32, %arg1: memref<64x4xf32, #tpu.memory_space<vmem>>, %arg2: memref<4x256xbf16, #tpu.memory_space<vmem>>, %arg3: memref<1x256xf32, #tpu.memory_space<vmem>>, %arg4: memref<1x256xf32, #tpu.memory_space<vmem>>, %arg5: memref<64x132xf32, #tpu.memory_space<vmem>>) attributes {dimension_semantics = [#tpu.dimension_semantics<parallel>], iteration_bounds = array<i64: 2>, scalar_prefetch = 0 : i64, scratch_operands = 0 : i64, tpu.core_type = #tpu.core_type<tc>, window_params = [{transform_indices = @transform_0, window_bounds = array<i64: 64, 4>}, {pipeline_mode = #tpu.pipeline_mode<synchronous>, transform_indices = @transform_1, window_bounds = array<i64: 4, 256>}, {pipeline_mode = #tpu.pipeline_mode<synchronous>, transform_indices = @transform_2, window_bounds = array<i64: 1, 256>}, {pipeline_mode = #tpu.pipeline_mode<synchronous>, transform_indices = @transform_3, window_bounds = array<i64: 1, 256>}, {transform_indices = @transform_4, window_bounds = array<i64: 64, 132>}]} {
    %c0 = arith.constant 0 : index
    %c0_0 = arith.constant 0 : index
    %0 = vector.load %arg1[%c0, %c0_0] : memref<64x4xf32, #tpu.memory_space<vmem>>, vector<64x4xf32>
    %c0_1 = arith.constant 0 : index
    %c0_2 = arith.constant 0 : index
    %1 = vector.load %arg2[%c0_1, %c0_2] : memref<4x256xbf16, #tpu.memory_space<vmem>>, vector<4x256xbf16>
    %2 = arith.truncf %0 : vector<64x4xf32> to vector<64x4xbf16>
    %3 = arith.extf %2 : vector<64x4xbf16> to vector<64x4xf32>
    %4 = arith.subf %0, %3 : vector<64x4xf32>
    %5 = arith.truncf %4 : vector<64x4xf32> to vector<64x4xbf16>
    %6 = arith.extf %5 : vector<64x4xbf16> to vector<64x4xf32>
    %7 = arith.subf %4, %6 : vector<64x4xf32>
    %8 = arith.truncf %7 : vector<64x4xf32> to vector<64x4xbf16>
    %cst = arith.constant dense<0.000000e+00> : vector<64x256xf32>
    %9 = tpu.matmul %2, %1, %cst {dimension_numbers = #tpu.dot_dimension_numbers<[1], [0], [0], [1], [0, 0, 1, 1], [], []>} : vector<64x4xbf16>, vector<4x256xbf16>, vector<64x256xf32> -> vector<64x256xf32>
    %cst_3 = arith.constant dense<0.000000e+00> : vector<64x256xf32>
    %10 = tpu.matmul %5, %1, %cst_3 {dimension_numbers = #tpu.dot_dimension_numbers<[1], [0], [0], [1], [0, 0, 1, 1], [], []>} : vector<64x4xbf16>, vector<4x256xbf16>, vector<64x256xf32> -> vector<64x256xf32>
    %11 = arith.addf %9, %10 : vector<64x256xf32>
    %cst_4 = arith.constant dense<0.000000e+00> : vector<64x256xf32>
    %12 = tpu.matmul %8, %1, %cst_4 {dimension_numbers = #tpu.dot_dimension_numbers<[1], [0], [0], [1], [0, 0, 1, 1], [], []>} : vector<64x4xbf16>, vector<4x256xbf16>, vector<64x256xf32> -> vector<64x256xf32>
    %13 = arith.addf %11, %12 : vector<64x256xf32>
    %c0_5 = arith.constant 0 : index
    %c0_6 = arith.constant 0 : index
    %14 = vector.load %arg3[%c0_5, %c0_6] : memref<1x256xf32, #tpu.memory_space<vmem>>, vector<1x256xf32>
    %15 = vector.broadcast %14 : vector<1x256xf32> to vector<64x256xf32>
    %16 = arith.mulf %13, %15 : vector<64x256xf32>
    %c0_7 = arith.constant 0 : index
    %c0_8 = arith.constant 0 : index
    %17 = vector.load %arg4[%c0_7, %c0_8] : memref<1x256xf32, #tpu.memory_space<vmem>>, vector<1x256xf32>
    %18 = vector.broadcast %17 : vector<1x256xf32> to vector<64x256xf32>
    %19 = arith.addf %16, %18 : vector<64x256xf32>
    %20 = math.sin %19 : vector<64x256xf32>
    %21 = tpu.iota {dimensions = array<i32: 1>} : vector<1x256xi32>
    %c128_i32 = arith.constant 128 : i32
    %22 = vector.broadcast %c128_i32 : i32 to vector<1x256xi32>
    %23 = arith.cmpi slt, %21, %22 : vector<1x256xi32>
    %24 = vector.shape_cast %23 : vector<1x256xi1> to vector<1x256xi1>
    %25 = vector.broadcast %24 : vector<1x256xi1> to vector<64x256xi1>
    %26 = arith.select %25, %20, %19 : vector<64x256xi1>, vector<64x256xf32>
    %27 = vector.extract_strided_slice %26 {offsets = [0, 0], sizes = [64, 132], strides = [1, 1]} : vector<64x256xf32> to vector<64x132xf32>
    %c0_9 = arith.constant 0 : index
    %c0_10 = arith.constant 0 : index
    %28 = vector.load %arg5[%c0_9, %c0_10] : memref<64x132xf32, #tpu.memory_space<vmem>>, vector<64x132xf32>
    tpu.vector_store %arg5[%c0_9, %c0_10], %27 {strides = array<i32>} : memref<64x132xf32, #tpu.memory_space<vmem>>, vector<64x132xf32>,
    return
  }
  func.func @transform_0(%arg0: i32) -> (i32, i32) {
    %c0_i32 = arith.constant 0 : i32
    %c0_i32_0 = arith.constant 0 : i32
    return %arg0, %c0_i32 : i32, i32
  }
  func.func @transform_1(%arg0: i32) -> (i32, i32) {
    %c0_i32 = arith.constant 0 : i32
    %c0_i32_0 = arith.constant 0 : i32
    %c0_i32_1 = arith.constant 0 : i32
    return %c0_i32, %c0_i32_0 : i32, i32
  }
  func.func @transform_2(%arg0: i32) -> (i32, i32) {
    %c0_i32 = arith.constant 0 : i32
    %c0_i32_0 = arith.constant 0 : i32
    %c0_i32_1 = arith.constant 0 : i32
    return %c0_i32, %c0_i32_0 : i32, i32
  }
  func.func @transform_3(%arg0: i32) -> (i32, i32) {
    %c0_i32 = arith.constant 0 : i32
    %c0_i32_0 = arith.constant 0 : i32
    %c0_i32_1 = arith.constant 0 : i32
    return %c0_i32, %c0_i32_0 : i32, i32
  }
  func.func @transform_4(%arg0: i32) -> (i32, i32) {
    %c0_i32 = arith.constant 0 : i32
    %c0_i32_0 = arith.constant 0 : i32
    return %arg0, %c0_i32 : i32, i32
  }
}

</mosaic_0001>

<llo_original>
// kernel: tpu_custom_call.1
$region0: #{tpu_custom_call.1}
  #allocation0 [shape = 'u32[]', space=smem, size = 0x4, offset = 0x4, fixed_abs, tag = 'smem constant byte address 0x4 - core index']
  #allocation1 [shape = 'u32[144,128]{1,0:T(1,128)}', space=vmem, size = 0x12000, scoped, tag = 'internal scratch']
  %s0 = inlined_call_operand.vmem [shape: f32[128,4], index: 0, kind: input, shape index: {}]
  %s1 = inlined_call_operand.vmem [shape: bf16[4,256], index: 1, kind: input, shape index: {}]
  %s2 = inlined_call_operand.vmem [shape: f32[1,256], index: 2, kind: input, shape index: {}]
  %s3 = inlined_call_operand.vmem [shape: f32[1,256], index: 3, kind: input, shape index: {}]
  %s4 = inlined_call_operand.vmem [shape: f32[128,132], index: 4, kind: output, shape index: {}]
  %s5 = sld [smem:[#allocation0]]
  $region49: #{tpu_custom_call.1} parent=0
    _
  %s7 = ssub.s32 1, %s5
  %s8 = scalar_select 0, %s7, %s5
  loop: start=0, step=1, limit=4
  $region2: #{tpu_custom_call.1} parent=0 // loop_pre_header
    _
  $region3: #{tpu_custom_call.1} parent=0 // loop_header
    %s10 = sphi 0, %s14
    %p11 = scmp.ge.s32.totalorder %s10, 4
    %s20 = sphi 0, %s22
    %s23 = sphi 0, %s20
    %s24 = sphi 0, %s23
    %s40 = sphi 0, %s24
    %s44 = sphi 0, %s44
    %s46 = sphi 0, %s44
    %s47 = sphi 0, %s46
    %s61 = sphi 0, %s47
    %s65 = sphi 0, %s65
    %s67 = sphi 0, %s65
    %s68 = sphi 0, %s67
    %s82 = sphi 0, %s68
    %s86 = sphi 0, %s86
    %s88 = sphi 0, %s86
    %s89 = sphi 0, %s88
    %s103 = sphi 0, %s89
    %s109 = sphi 0, %s111
    %s112 = sphi 0, %s109
    %s113 = sphi 0, %s112
    %s129 = sphi 0, %s113
  $region4: #{tpu_custom_call.1} parent=0 // loop_header_branch
    %13 = sbr.rel (%p11) target = $region8
  $region5: #{tpu_custom_call.1} parent=0 // loop_body
    %s15 = ssub.s32 %s10, 1
    %s16 = ssub.s32 %s10, 2
    %s17 = sadd.s32 %s10, 1
    %s18 = ssub.s32 %s10, %s17
    %p19 = scmp.eq.s32.totalorder %s18, 0
    %s21 = sadd.s32 %s20, 1
    %s22 = scalar_select %p19, %s20, %s21
    %p25 = pneg %p19
    %p26 = scmp.eq.s32.totalorder %s10, 1
    %p27 = por %p25, %p26
    %p28 = scmp.ne.s32.totalorder %s20, %s23
    %p29 = scmp.eq.s32.totalorder %s10, 0
    %p30 = por %p28, %p29
    %p31 = scmp.ne.s32.totalorder %s20, %s23
    %p32 = scmp.eq.s32.totalorder %s15, 1
    %p33 = por %p31, %p32
    %p34 = scmp.ne.s32.totalorder %s23, %s24
    %p35 = scmp.eq.s32.totalorder %s15, 0
    %p36 = por %p34, %p35
    %p37 = scmp.ne.s32.totalorder %s23, %s24
    %p38 = scmp.eq.s32.totalorder %s16, 1
    %p39 = por %p37, %p38
    %p41 = scmp.ne.s32.totalorder %s24, %s40
    %p42 = scmp.eq.s32.totalorder %s16, 0
    %p43 = por %p41, %p42
    %s45 = sadd.s32 %s44, 1
    %p48 = scmp.eq.s32.totalorder %s10, 1
    %p49 = scmp.ne.s32.totalorder %s44, %s46
    %p50 = scmp.eq.s32.totalorder %s10, 0
    %p51 = por %p49, %p50
    %p52 = scmp.ne.s32.totalorder %s44, %s46
    %p53 = scmp.eq.s32.totalorder %s15, 1
    %p54 = por %p52, %p53
    %p55 = scmp.ne.s32.totalorder %s46, %s47
    %p56 = scmp.eq.s32.totalorder %s15, 0
    %p57 = por %p55, %p56
    %p58 = scmp.ne.s32.totalorder %s46, %s47
    %p59 = scmp.eq.s32.totalorder %s16, 1
    %p60 = por %p58, %p59
    %p62 = scmp.ne.s32.totalorder %s47, %s61
    %p63 = scmp.eq.s32.totalorder %s16, 0
    %p64 = por %p62, %p63
    %s66 = sadd.s32 %s65, 1
    %p69 = scmp.eq.s32.totalorder %s10, 1
    %p70 = scmp.ne.s32.totalorder %s65, %s67
    %p71 = scmp.eq.s32.totalorder %s10, 0
    %p72 = por %p70, %p71
    %p73 = scmp.ne.s32.totalorder %s65, %s67
    %p74 = scmp.eq.s32.totalorder %s15, 1
    %p75 = por %p73, %p74
    %p76 = scmp.ne.s32.totalorder %s67, %s68
    %p77 = scmp.eq.s32.totalorder %s15, 0
    %p78 = por %p76, %p77
    %p79 = scmp.ne.s32.totalorder %s67, %s68
    %p80 = scmp.eq.s32.totalorder %s16, 1
    %p81 = por %p79, %p80
    %p83 = scmp.ne.s32.totalorder %s68, %s82
    %p84 = scmp.eq.s32.totalorder %s16, 0
    %p85 = por %p83, %p84
    %s87 = sadd.s32 %s86, 1
    %p90 = scmp.eq.s32.totalorder %s10, 1
    %p91 = scmp.ne.s32.totalorder %s86, %s88
    %p92 = scmp.eq.s32.totalorder %s10, 0
    %p93 = por %p91, %p92
    %p94 = scmp.ne.s32.totalorder %s86, %s88
    %p95 = scmp.eq.s32.totalorder %s15, 1
    %p96 = por %p94, %p95
    %p97 = scmp.ne.s32.totalorder %s88, %s89
    %p98 = scmp.eq.s32.totalorder %s15, 0
    %p99 = por %p97, %p98
    %p100 = scmp.ne.s32.totalorder %s88, %s89
    %p101 = scmp.eq.s32.totalorder %s16, 1
    %p102 = por %p100, %p101
    %p104 = scmp.ne.s32.totalorder %s89, %s103
    %p105 = scmp.eq.s32.totalorder %s16, 0
    %p106 = por %p104, %p105
    %s107 = ssub.s32 %s10, %s17
    %p108 = scmp.eq.s32.totalorder %s107, 0
    %s110 = sadd.s32 %s109, 1
    %s111 = scalar_select %p108, %s109, %s110
    %p114 = pneg %p108
    %p115 = scmp.eq.s32.totalorder %s10, 1
    %p116 = por %p114, %p115
    %p117 = scmp.ne.s32.totalorder %s109, %s112
    %p118 = scmp.eq.s32.totalorder %s10, 0
    %p119 = por %p117, %p118
    %p120 = scmp.ne.s32.totalorder %s109, %s112
    %p121 = scmp.eq.s32.totalorder %s15, 1
    %p122 = por %p120, %p121
    %p123 = scmp.ne.s32.totalorder %s112, %s113
    %p124 = scmp.eq.s32.totalorder %s15, 0
    %p125 = por %p123, %p124
    %p126 = scmp.ne.s32.totalorder %s112, %s113
    %p127 = scmp.eq.s32.totalorder %s16, 1
    %p128 = por %p126, %p127
    %p130 = scmp.ne.s32.totalorder %s113, %s129
    %p131 = scmp.eq.s32.totalorder %s16, 0
    %p132 = por %p130, %p131
    %p133 = scmp.le.s32.totalorder 1, %s10
    %p134 = scmp.lt.s32.totalorder %s10, 3
    %p135 = pnand %p133, %p134
    %p136 = pneg %p135
    // Predicated region
    $region9: #{tpu_custom_call.1} parent=5 // pred_check
      _
    $region10: #{tpu_custom_call.1} parent=5 // pred_check_branch
      %138 = sbr.rel (%p135) target = $region12
    $region11: #{tpu_custom_call.1} parent=5 // pred_region
      %s139 = ssub.s32 %s10, 1
      // Predicated region
      $region13: #{tpu_custom_call.1} parent=11 // pred_check
        %p140 = pneg %p57
      $region14: #{tpu_custom_call.1} parent=11 // pred_check_branch
        %142 = sbr.rel (%p140) target = $region16
      $region15: #{tpu_custom_call.1} parent=11 // pred_region
        _
      $region16: #{tpu_custom_call.1} parent=11 // pred_fallthru
        _
      // Predicated region
      $region17: #{tpu_custom_call.1} parent=11 // pred_check
        %p143 = pneg %p78
      $region18: #{tpu_custom_call.1} parent=11 // pred_check_branch
        %145 = sbr.rel (%p143) target = $region20
      $region19: #{tpu_custom_call.1} parent=11 // pred_region
        _
      $region20: #{tpu_custom_call.1} parent=11 // pred_fallthru
        _
      // Predicated region
      $region21: #{tpu_custom_call.1} parent=11 // pred_check
        %p146 = pneg %p99
      $region22: #{tpu_custom_call.1} parent=11 // pred_check_branch
        %148 = sbr.rel (%p146) target = $region24
      $region23: #{tpu_custom_call.1} parent=11 // pred_region
        _
      $region24: #{tpu_custom_call.1} parent=11 // pred_fallthru
        _
    $region12: #{tpu_custom_call.1} parent=5 // pred_fallthru
      _
    %p149 = scmp.lt.s32.totalorder %s10, 2
    // Predicated region
    $region25: #{tpu_custom_call.1} parent=5 // pred_check
      %p150 = pneg %p149
    $region26: #{tpu_custom_call.1} parent=5 // pred_check_branch
      %152 = sbr.rel (%p150) target = $region28
    $region27: #{tpu_custom_call.1} parent=5 // pred_region
      // Predicated region
      $region29: #{tpu_custom_call.1} parent=27 // pred_check
        %p153 = pneg %p30
      $region30: #{tpu_custom_call.1} parent=27 // pred_check_branch
        %155 = sbr.rel (%p153) target = $region32
      $region31: #{tpu_custom_call.1} parent=27 // pred_region
        %s156 = smul.u32 8, %s10
        %p157 = scmp.lt.s32.totalorder %s156, 15
        %s158 = scalar_select %p157, %s156, 15
        %s159 = smul.addr %s158, 8
        %s160 = scalar_lea.vmem %s0, %s159
        %s161 = smul.u32 8, %s10
      $region32: #{tpu_custom_call.1} parent=27 // pred_fallthru
        _
    $region28: #{tpu_custom_call.1} parent=5 // pred_fallthru
      _
    %p162 = scmp.le.s32.totalorder 1, %s10
    %p163 = scmp.lt.s32.totalorder %s10, 3
    %p164 = pnand %p162, %p163
    %p165 = pneg %p164
    // Predicated region
    $region33: #{tpu_custom_call.1} parent=5 // pred_check
      _
    $region34: #{tpu_custom_call.1} parent=5 // pred_check_branch
      %167 = sbr.rel (%p164) target = $region36
    $region35: #{tpu_custom_call.1} parent=5 // pred_region
      %s168 = ssub.s32 %s10, 1
      %s169 = smul.u32 8, %s15
      %p170 = scmp.lt.s32.totalorder %s169, 15
      %s171 = scalar_select %p170, %s169, 15
      %s172 = smul.addr %s171, 8
      %s173 = scalar_lea.vmem %s0, %s172
      %p174 = pneg %p36
      %p175 = pneg %p33
      %p176 = pneg %p57
      %p177 = pneg %p54
      %p178 = pneg %p78
      %p179 = pneg %p75
      %p180 = pneg %p99
      %p181 = pneg %p96
      %p182 = pneg %p125
      %p183 = pneg %p122
      %s184 = smul.u32 8, %s15
      %p185 = scmp.lt.s32.totalorder %s184, 15
      %s186 = scalar_select %p185, %s184, 15
      %s187 = smul.addr %s186, 2
      %s188 = smul.addr %s187, 8
      %s189 = scalar_lea.vmem %s4, %s188
      %s190 = smul.u32 8, %s15
      %p191 = scmp.lt.s32.totalorder %s190, 15
      %s192 = scalar_select %p191, %s190, 15
      %s193 = smul.addr %s192, 8
      %s194 = scalar_lea.vmem %s0, %s193
      %s195 = smul.u32 8, %s15
      %s196 = smul.u32 8, %s15
      %p197 = scmp.lt.s32.totalorder %s196, 15
      %s198 = scalar_select %p197, %s196, 15
      %s199 = smul.addr %s198, 2
      %s200 = smul.addr %s199, 8
      %s201 = scalar_lea.vmem %s4, %s200
      %s202 = smul.u32 8, %s15
      %v204 = vld [vmem:[%s194] sm:$0xff]
      %v205 = vld [vmem:[%s194 + $0x8] sm:$0xff]
      %v206 = vld [vmem:[%s194 + $0x10] sm:$0xff]
      %v207 = vld [vmem:[%s194 + $0x18] sm:$0xff]
      %v208 = vld [vmem:[%s194 + $0x20] sm:$0xff]
      %v209 = vld [vmem:[%s194 + $0x28] sm:$0xff]
      %v210 = vld [vmem:[%s194 + $0x30] sm:$0xff]
      %v211 = vld [vmem:[%s194 + $0x38] sm:$0xff]
      %v212 = vld [vmem:[%s1] sm:$0xf]
      %v213 = vpack.c.bf16 %v205, %v204
      %v214 = vpack.c.bf16 %v207, %v206
      %v215 = vpack.c.bf16 %v209, %v208
      %v216 = vpack.c.bf16 %v211, %v210
      %v217 = vunpack.c.l.bf16 %v213
      %v218 = vunpack.c.h.bf16 %v213
      %v219 = vunpack.c.l.bf16 %v214
      %v220 = vunpack.c.h.bf16 %v214
      %v221 = vunpack.c.l.bf16 %v215
      %v222 = vunpack.c.h.bf16 %v215
      %v223 = vunpack.c.l.bf16 %v216
      %v224 = vunpack.c.h.bf16 %v216
      %v225 = vsub.f32 %v204, %v217
      %v226 = vsub.f32 %v205, %v218
      %v227 = vsub.f32 %v206, %v219
      %v228 = vsub.f32 %v207, %v220
      %v229 = vsub.f32 %v208, %v221
      %v230 = vsub.f32 %v209, %v222
      %v231 = vsub.f32 %v210, %v223
      %v232 = vsub.f32 %v211, %v224
      %v233 = vpack.c.bf16 %v226, %v225
      %v234 = vpack.c.bf16 %v228, %v227
      %v235 = vpack.c.bf16 %v230, %v229
      %v236 = vpack.c.bf16 %v232, %v231
      %v237 = vunpack.c.l.bf16 %v233
      %v238 = vunpack.c.h.bf16 %v233
      %v239 = vunpack.c.l.bf16 %v234
      %v240 = vunpack.c.h.bf16 %v234
      %v241 = vunpack.c.l.bf16 %v235
      %v242 = vunpack.c.h.bf16 %v235
      %v243 = vunpack.c.l.bf16 %v236
      %v244 = vunpack.c.h.bf16 %v236
      %v245 = vsub.f32 %v225, %v237
      %v246 = vsub.f32 %v226, %v238
      %v247 = vsub.f32 %v227, %v239
      %v248 = vsub.f32 %v228, %v240
      %v249 = vsub.f32 %v229, %v241
      %v250 = vsub.f32 %v230, %v242
      %v251 = vsub.f32 %v231, %v243
      %v252 = vsub.f32 %v232, %v244
      %v253 = vpack.c.bf16 %v246, %v245
      %v254 = vpack.c.bf16 %v248, %v247
      %v255 = vpack.c.bf16 %v250, %v249
      %v256 = vpack.c.bf16 %v252, %v251
      %v259 = vunpack.c.l.s4 1983009808
      %v260 = vunpack.c.0.s8 %v259
      %v261 = vlaneseq
      %v262 = vshrl.u32 %v261, 7
      %v263 = vsub.s32 %v260, %v262
      %v264 = vrot.slane %v212, %v263
      %v265 = vcombine.high %v264, %v264
      %vm266 = vcmask 31744
      %v268 = vsel %vm266, %v233, 0
      %v271 = vsel %vm266, %v234, 0
      %v274 = vsel %vm266, %v235, 0
      %v277 = vsel %vm266, %v236, 0
      %vm279 = vcmask 1041408
      %v281 = vsel %vm279, %v264, 0
      %v284 = vsel %vm279, %v265, 0
      %286 = vmatprep.subr.bf16.mxu0 %v284
      %287 = vmatpush1.bf16.msra.mxu0 %v281
      %288 = vmatprep.subr.bf16.mxu0 0
      %289 = vmatpush1.bf16.msra.mxu0 0
      %290 = vmatprep.subr.bf16.mxu0 0
      %291 = vmatpush1.bf16.msra.mxu0 0
      %292 = vmatprep.subr.bf16.mxu0 0
      %293 = vmatpush1.bf16.msra.mxu0 0
      %294 = vmatprep.subr.bf16.mxu0 0
      %295 = vmatpush1.bf16.msra.mxu0 0
      %296 = vmatprep.subr.bf16.mxu0 0
      %297 = vmatpush1.bf16.msra.mxu0 0
      %298 = vmatprep.subr.bf16.mxu0 0
      %299 = vmatpush1.bf16.msra.mxu0 0
      %300 = vmatprep.subr.bf16.mxu0 0
      %301 = vmatpush1.bf16.msra.mxu0 0
      %302 = vmatprep.subr.bf16.mxu0 0
      %303 = vmatpush1.bf16.msra.mxu0 0
      %304 = vmatprep.subr.bf16.mxu0 0
      %305 = vmatpush1.bf16.msra.mxu0 0
      %306 = vmatprep.subr.bf16.mxu0 0
      %307 = vmatpush1.bf16.msra.mxu0 0
      %308 = vmatprep.subr.bf16.mxu0 0
      %309 = vmatpush1.bf16.msra.mxu0 0
      %310 = vmatprep.subr.bf16.mxu0 0
      %311 = vmatpush1.bf16.msra.mxu0 0
      %312 = vmatprep.subr.bf16.mxu0 0
      %313 = vmatpush1.bf16.msra.mxu0 0
      %314 = vmatprep.subr.bf16.mxu0 0
      %315 = vmatpush1.bf16.msra.mxu0 0
      %316 = vmatprep.subr.bf16.mxu0 0
      %317 = vmatpush1.bf16.msra.mxu0 0
      %318 = vmatprep.mubr.bf16.mxu0 0
      %319 = vmatmul.mubr.bf16.gmra.mrb[0].mxu0 %v268
      %v320 = vpop.f32.mrb[0].mxu0
      %v321 = vadd.f32 0.0, %v320
      %v322 = vpop.f32.mrb[0].mxu0
      %v323 = vadd.f32 0.0, %v322
      %v324 = vpop.f32.mrb[0].mxu0
      %v325 = vadd.f32 0.0, %v324
      %v326 = vpop.f32.mrb[0].mxu0
      %v327 = vadd.f32 0.0, %v326
      %328 = vmatprep.mubr.bf16.mxu0 0
      %329 = vmatmul.mubr.bf16.gmra.mrb[0].mxu0 %v271
      %v330 = vpop.f32.mrb[0].mxu0
      %v331 = vadd.f32 0.0, %v330
      %v332 = vpop.f32.mrb[0].mxu0
      %v333 = vadd.f32 0.0, %v332
      %v334 = vpop.f32.mrb[0].mxu0
      %v335 = vadd.f32 0.0, %v334
      %v336 = vpop.f32.mrb[0].mxu0
      %v337 = vadd.f32 0.0, %v336
      %338 = vmatprep.mubr.bf16.mxu0 0
      %339 = vmatmul.mubr.bf16.gmra.mrb[0].mxu0 %v274
      %v340 = vpop.f32.mrb[0].mxu0
      %v341 = vadd.f32 0.0, %v340
      %v342 = vpop.f32.mrb[0].mxu0
      %v343 = vadd.f32 0.0, %v342
      %v344 = vpop.f32.mrb[0].mxu0
      %v345 = vadd.f32 0.0, %v344
      %v346 = vpop.f32.mrb[0].mxu0
      %v347 = vadd.f32 0.0, %v346
      %348 = vmatprep.mubr.bf16.mxu0 0
      %349 = vmatmul.mubr.bf16.gmra.mrb[0].mxu0 %v277
      %v350 = vpop.f32.mrb[0].mxu0
      %v351 = vadd.f32 0.0, %v350
      %v352 = vpop.f32.mrb[0].mxu0
      %v353 = vadd.f32 0.0, %v352
      %v354 = vpop.f32.mrb[0].mxu0
      %v355 = vadd.f32 0.0, %v354
      %v356 = vpop.f32.mrb[0].mxu0
      %v357 = vadd.f32 0.0, %v356
      %358 = vdwg.mxu0
      %v360 = vsel %vm266, %v213, 0
      %v363 = vsel %vm266, %v214, 0
      %v366 = vsel %vm266, %v215, 0
      %v369 = vsel %vm266, %v216, 0
      %371 = vmatprep.subr.bf16.mxu0 %v284
      %372 = vmatpush1.bf16.msra.mxu0 %v281
      %373 = vmatprep.subr.bf16.mxu0 0
      %374 = vmatpush1.bf16.msra.mxu0 0
      %375 = vmatprep.subr.bf16.mxu0 0
      %376 = vmatpush1.bf16.msra.mxu0 0
      %377 = vmatprep.subr.bf16.mxu0 0
      %378 = vmatpush1.bf16.msra.mxu0 0
      %379 = vmatprep.subr.bf16.mxu0 0
      %380 = vmatpush1.bf16.msra.mxu0 0
      %381 = vmatprep.subr.bf16.mxu0 0
      %382 = vmatpush1.bf16.msra.mxu0 0
      %383 = vmatprep.subr.bf16.mxu0 0
      %384 = vmatpush1.bf16.msra.mxu0 0
      %385 = vmatprep.subr.bf16.mxu0 0
      %386 = vmatpush1.bf16.msra.mxu0 0
      %387 = vmatprep.subr.bf16.mxu0 0
      %388 = vmatpush1.bf16.msra.mxu0 0
      %389 = vmatprep.subr.bf16.mxu0 0
      %390 = vmatpush1.bf16.msra.mxu0 0
      %391 = vmatprep.subr.bf16.mxu0 0
      %392 = vmatpush1.bf16.msra.mxu0 0
      %393 = vmatprep.subr.bf16.mxu0 0
      %394 = vmatpush1.bf16.msra.mxu0 0
      %395 = vmatprep.subr.bf16.mxu0 0
      %396 = vmatpush1.bf16.msra.mxu0 0
      %397 = vmatprep.subr.bf16.mxu0 0
      %398 = vmatpush1.bf16.msra.mxu0 0
      %399 = vmatprep.subr.bf16.mxu0 0
      %400 = vmatpush1.bf16.msra.mxu0 0
      %401 = vmatprep.subr.bf16.mxu0 0
      %402 = vmatpush1.bf16.msra.mxu0 0
      %403 = vmatprep.mubr.bf16.mxu0 0
      %404 = vmatmul.mubr.bf16.gmra.mrb[0].mxu0 %v360
      %v405 = vpop.f32.mrb[0].mxu0
      %v406 = vadd.f32 %v321, %v405
      %v407 = vpop.f32.mrb[0].mxu0
      %v408 = vadd.f32 %v323, %v407
      %v409 = vpop.f32.mrb[0].mxu0
      %v410 = vadd.f32 %v325, %v409
      %v411 = vpop.f32.mrb[0].mxu0
      %v412 = vadd.f32 %v327, %v411
      %413 = vmatprep.mubr.bf16.mxu0 0
      %414 = vmatmul.mubr.bf16.gmra.mrb[0].mxu0 %v363
      %v415 = vpop.f32.mrb[0].mxu0
      %v416 = vadd.f32 %v331, %v415
      %v417 = vpop.f32.mrb[0].mxu0
      %v418 = vadd.f32 %v333, %v417
      %v419 = vpop.f32.mrb[0].mxu0
      %v420 = vadd.f32 %v335, %v419
      %v421 = vpop.f32.mrb[0].mxu0
      %v422 = vadd.f32 %v337, %v421
      %423 = vmatprep.mubr.bf16.mxu0 0
      %424 = vmatmul.mubr.bf16.gmra.mrb[0].mxu0 %v366
      %v425 = vpop.f32.mrb[0].mxu0
      %v426 = vadd.f32 %v341, %v425
      %v427 = vpop.f32.mrb[0].mxu0
      %v428 = vadd.f32 %v343, %v427
      %v429 = vpop.f32.mrb[0].mxu0
      %v430 = vadd.f32 %v345, %v429
      %v431 = vpop.f32.mrb[0].mxu0
      %v432 = vadd.f32 %v347, %v431
      %433 = vmatprep.mubr.bf16.mxu0 0
      %434 = vmatmul.mubr.bf16.gmra.mrb[0].mxu0 %v369
      %v435 = vpop.f32.mrb[0].mxu0
      %v436 = vadd.f32 %v351, %v435
      %v437 = vpop.f32.mrb[0].mxu0
      %v438 = vadd.f32 %v353, %v437
      %v439 = vpop.f32.mrb[0].mxu0
      %v440 = vadd.f32 %v355, %v439
      %v441 = vpop.f32.mrb[0].mxu0
      %v442 = vadd.f32 %v357, %v441
      %443 = vdwg.mxu0
      %v445 = vsel %vm266, %v253, 0
      %v448 = vsel %vm266, %v254, 0
      %v451 = vsel %vm266, %v255, 0
      %v454 = vsel %vm266, %v256, 0
      %456 = vmatprep.subr.bf16.mxu0 %v284
      %457 = vmatpush1.bf16.msra.mxu0 %v281
      %458 = vmatprep.subr.bf16.mxu0 0
      %459 = vmatpush1.bf16.msra.mxu0 0
      %460 = vmatprep.subr.bf16.mxu0 0
      %461 = vmatpush1.bf16.msra.mxu0 0
      %462 = vmatprep.subr.bf16.mxu0 0
      %463 = vmatpush1.bf16.msra.mxu0 0
      %464 = vmatprep.subr.bf16.mxu0 0
      %465 = vmatpush1.bf16.msra.mxu0 0
      %466 = vmatprep.subr.bf16.mxu0 0
      %467 = vmatpush1.bf16.msra.mxu0 0
      %468 = vmatprep.subr.bf16.mxu0 0
      %469 = vmatpush1.bf16.msra.mxu0 0
      %470 = vmatprep.subr.bf16.mxu0 0
      %471 = vmatpush1.bf16.msra.mxu0 0
      %472 = vmatprep.subr.bf16.mxu0 0
      %473 = vmatpush1.bf16.msra.mxu0 0
      %474 = vmatprep.subr.bf16.mxu0 0
      %475 = vmatpush1.bf16.msra.mxu0 0
      %476 = vmatprep.subr.bf16.mxu0 0
      %477 = vmatpush1.bf16.msra.mxu0 0
      %478 = vmatprep.subr.bf16.mxu0 0
      %479 = vmatpush1.bf16.msra.mxu0 0
      %480 = vmatprep.subr.bf16.mxu0 0
      %481 = vmatpush1.bf16.msra.mxu0 0
      %482 = vmatprep.subr.bf16.mxu0 0
      %483 = vmatpush1.bf16.msra.mxu0 0
      %484 = vmatprep.subr.bf16.mxu0 0
      %485 = vmatpush1.bf16.msra.mxu0 0
      %486 = vmatprep.subr.bf16.mxu0 0
      %487 = vmatpush1.bf16.msra.mxu0 0
      %488 = vmatprep.mubr.bf16.mxu0 0
      %489 = vmatmul.mubr.bf16.gmra.mrb[0].mxu0 %v445
      %v490 = vpop.f32.mrb[0].mxu0
      %v491 = vadd.f32 0.0, %v490
      %v492 = vpop.f32.mrb[0].mxu0
      %v493 = vadd.f32 0.0, %v492
      %v494 = vpop.f32.mrb[0].mxu0
      %v495 = vadd.f32 0.0, %v494
      %v496 = vpop.f32.mrb[0].mxu0
      %v497 = vadd.f32 0.0, %v496
      %498 = vmatprep.mubr.bf16.mxu0 0
      %499 = vmatmul.mubr.bf16.gmra.mrb[0].mxu0 %v448
      %v500 = vpop.f32.mrb[0].mxu0
      %v501 = vadd.f32 0.0, %v500
      %v502 = vpop.f32.mrb[0].mxu0
      %v503 = vadd.f32 0.0, %v502
      %v504 = vpop.f32.mrb[0].mxu0
      %v505 = vadd.f32 0.0, %v504
      %v506 = vpop.f32.mrb[0].mxu0
      %v507 = vadd.f32 0.0, %v506
      %508 = vmatprep.mubr.bf16.mxu0 0
      %509 = vmatmul.mubr.bf16.gmra.mrb[0].mxu0 %v451
      %v510 = vpop.f32.mrb[0].mxu0
      %v511 = vadd.f32 0.0, %v510
      %v512 = vpop.f32.mrb[0].mxu0
      %v513 = vadd.f32 0.0, %v512
      %v514 = vpop.f32.mrb[0].mxu0
      %v515 = vadd.f32 0.0, %v514
      %v516 = vpop.f32.mrb[0].mxu0
      %v517 = vadd.f32 0.0, %v516
      %518 = vmatprep.mubr.bf16.mxu0 0
      %519 = vmatmul.mubr.bf16.gmra.mrb[0].mxu0 %v454
      %v520 = vpop.f32.mrb[0].mxu0
      %v521 = vadd.f32 0.0, %v520
      %v522 = vpop.f32.mrb[0].mxu0
      %v523 = vadd.f32 0.0, %v522
      %v524 = vpop.f32.mrb[0].mxu0
      %v525 = vadd.f32 0.0, %v524
      %v526 = vpop.f32.mrb[0].mxu0
      %v527 = vadd.f32 0.0, %v526
      %528 = vdwg.mxu0
      %v529 = vadd.f32 %v406, %v491
      %v530 = vadd.f32 %v408, %v493
      %v531 = vadd.f32 %v410, %v495
      %v532 = vadd.f32 %v412, %v497
      %v533 = vadd.f32 %v416, %v501
      %v534 = vadd.f32 %v418, %v503
      %v535 = vadd.f32 %v420, %v505
      %v536 = vadd.f32 %v422, %v507
      %v537 = vadd.f32 %v426, %v511
      %v538 = vadd.f32 %v428, %v513
      %v539 = vadd.f32 %v430, %v515
      %v540 = vadd.f32 %v432, %v517
      %v541 = vadd.f32 %v436, %v521
      %v542 = vadd.f32 %v438, %v523
      %v543 = vadd.f32 %v440, %v525
      %v544 = vadd.f32 %v442, %v527
      %v545 = vld [vmem:[%s2] sm:$0x3]
      %v547 = vlaneseq
      %v548 = vshrl.u32 %v547, 7
      %v549 = vsub.s32 0, %v548
      %v550 = vrot.slane %v545, %v549
      %v551 = vlaneseq
      %v552 = vshrl.u32 %v551, 7
      %v553 = vsub.s32 1, %v552
      %v554 = vrot.slane %v545, %v553
      %v557 = vmul.f32 %v529, %v550
      %v558 = vmul.f32 %v530, %v554
      %v559 = vmul.f32 %v531, %v550
      %v560 = vmul.f32 %v532, %v554
      %v561 = vmul.f32 %v533, %v550
      %v562 = vmul.f32 %v534, %v554
      %v563 = vmul.f32 %v535, %v550
      %v564 = vmul.f32 %v536, %v554
      %v565 = vmul.f32 %v537, %v550
      %v566 = vmul.f32 %v538, %v554
      %v567 = vmul.f32 %v539, %v550
      %v568 = vmul.f32 %v540, %v554
      %v569 = vmul.f32 %v541, %v550
      %v570 = vmul.f32 %v542, %v554
      %v571 = vmul.f32 %v543, %v550
      %v572 = vmul.f32 %v544, %v554
      %v573 = vld [vmem:[%s3] sm:$0x3]
      %v575 = vlaneseq
      %v576 = vshrl.u32 %v575, 7
      %v577 = vsub.s32 0, %v576
      %v578 = vrot.slane %v573, %v577
      %v579 = vlaneseq
      %v580 = vshrl.u32 %v579, 7
      %v581 = vsub.s32 1, %v580
      %v582 = vrot.slane %v573, %v581
      %v585 = vadd.f32 %v557, %v578
      %v586 = vadd.f32 %v558, %v582
      %v587 = vadd.f32 %v559, %v578
      %v588 = vadd.f32 %v560, %v582
      %v589 = vadd.f32 %v561, %v578
      %v590 = vadd.f32 %v562, %v582
      %v591 = vadd.f32 %v563, %v578
      %v592 = vadd.f32 %v564, %v582
      %v593 = vadd.f32 %v565, %v578
      %v594 = vadd.f32 %v566, %v582
      %v595 = vadd.f32 %v567, %v578
      %v596 = vadd.f32 %v568, %v582
      %v597 = vadd.f32 %v569, %v578
      %v598 = vadd.f32 %v570, %v582
      %v599 = vadd.f32 %v571, %v578
      %v600 = vadd.f32 %v572, %v582
      %v601 = vand.u32 2147483647, %v585
      %vm602 = vcmp.le.f32.partialorder %v601, 0.7853982
      %vm603 = vcmp.lt.s32.totalorder %v585, 0
      %v604 = vand.u32 %v585, 2139095040
      %v605 = vshrl.u32 %v604, 23
      %v606 = vsub.s32 %v605, 127
      %v607 = vand.u32 2147483647, %v585
      %v608 = vand.u32 %v607, 8388607
      %v609 = vor.u32 %v608, 8388608
      %v610 = vsub.s32 0, %v609
      %v611 = vadd.s32 %v606, 1
      %vm612 = vcmp.gt.s32.totalorder %v611, 0
      %v613 = vsel %vm612, %v611, 0
      %v614 = vshrl.u32 %v613, 5
      %v615 = vand.u32 %v613, 31
      %v616 = vsub.s32 32, %v615
      %v617 = vshrl.u32 683565275, %v616
      %v618 = vshll.u32 683565275, %v615
      %v619 = vshrl.u32 2475754826, %v616
      %v620 = vor.u32 %v618, %v619
      %v621 = vshll.u32 2475754826, %v615
      %v622 = vshrl.u32 2131351028, %v616
      %v623 = vor.u32 %v621, %v622
      %v624 = vshll.u32 2131351028, %v615
      %v625 = vshrl.u32 2102212464, %v616
      %v626 = vor.u32 %v624, %v625
      %v627 = vshll.u32 2102212464, %v615
      %v628 = vshrl.u32 920167782, %v616
      %v629 = vor.u32 %v627, %v628
      %v630 = vshll.u32 920167782, %v615
      %v631 = vshrl.u32 1326507024, %v616
      %v632 = vor.u32 %v630, %v631
      %vm633 = vcmp.lt.s32.totalorder %v614, 1
      %vm634 = vcmp.lt.s32.totalorder %v614, 2
      %vm635 = vcmp.lt.s32.totalorder %v614, 3
      %vm636 = vcmp.lt.s32.totalorder %v614, 4
      %v637 = vsel %vm633, %v617, %v620
      %v638 = vsel %vm636, %v626, 2102212464
      %v639 = vsel %vm635, %v623, %v638
      %v640 = vsel %vm634, %v637, %v639
      %v641 = vsel %vm633, %v620, %v623
      %v642 = vsel %vm636, %v629, 920167782
      %v643 = vsel %vm635, %v626, %v642
      %v644 = vsel %vm634, %v641, %v643
      %v645 = vsel %vm633, %v623, %v626
      %v646 = vsel %vm636, %v632, 1326507024
      %v647 = vsel %vm635, %v629, %v646
      %v648 = vsel %vm634, %v645, %v647
      %v649 = vshll.u32 %v609, 8
      %v650 = vmul.u32.u64.compose %v649, %v648
      %v651 = vextract.low.u32 %v650
      %v652 = vextract.high.u32 %v650
      %v653 = vmul.u32.u64.compose %v649, %v644
      %v654 = vextract.low.u32 %v653
      %v655 = vextract.high.u32 %v653
      %v656 = vmul.u32 %v649, %v640
      %v657 = vadd.s32 %v652, %v654
      %vm658 = vc.u32 %v652, %v654
      %v659 = vadd.s32 %v655, 1
      %v660 = vsel %vm658, %v659, %v655
      %v661 = vadd.s32 %v656, %v660
      %v662 = vadd.s32 %v661, 536870912
      %v663 = vshrl.u32 %v662, 30
      %v664 = vshll.u32 %v663, 30
      %v665 = vsub.s32 %v661, %v664
      %vm666 = vcmp.lt.s32.totalorder %v665, 0
      %v667 = vsub.s32 0, %v665
      %v668 = vsel %vm666, %v667, %v665
      %v669 = vclz %v668
      %v670 = vsub.s32 %v669, 2
      %vm671 = vcmp.gt.s32.totalorder 0, %v670
      %v672 = vsel %vm671, 0, %v670
      %v673 = vsub.s32 32, %v672
      %v674 = vshll.u32 %v665, %v672
      %v675 = vshrl.u32 %v657, %v673
      %v676 = vor.u32 %v674, %v675
      %v677 = vsub.s32 4294967266, %v672
      %v678 = vadd.s32 %v677, 127
      %v679 = vshll.u32 %v678, 23
      %v680 = vor.u32 4788187, %v679
      %v681 = vand.u32 2147483647, %v680
      %v683 = vcvt.s32.f32 %v676
      %v684 = vmul.f32 %v683, %v681
      %v685 = vxor.u32 %v684, 2147483648
      %v686 = vsel %vm603, %v685, %v684
      %v687 = vsub.s32 4, %v663
      %v688 = vsel %vm603, %v687, %v663
      %v689 = vsel %vm602, %v585, %v686
      %v690 = vsel %vm602, 0, %v688
      %v691 = vcosq.f32.pop %v689
      %v692 = vsinq.f32.pop %v689
      %vm693 = vweird.f32 %v585
      %v694 = vadd.s32 %v690, 3
      %v695 = vand.u32 %v694, 3
      %vm696 = vcmp.lt.s32.totalorder %v695, 2
      %vm697 = vcmp.eq.s32.totalorder %v695, 0
      %v698 = vxor.u32 %v692, 2147483648
      %v699 = vsel %vm697, %v691, %v698
      %vm700 = vcmp.eq.s32.totalorder %v695, 2
      %v701 = vxor.u32 %v691, 2147483648
      %v702 = vsel %vm700, %v701, %v692
      %v703 = vsel %vm696, %v699, %v702
      %v704 = vsel %vm693, nan, %v703
      %v705 = vand.u32 2147483647, %v586
      %vm706 = vcmp.le.f32.partialorder %v705, 0.7853982
      %vm707 = vcmp.lt.s32.totalorder %v586, 0
      %v708 = vand.u32 %v586, 2139095040
      %v709 = vshrl.u32 %v708, 23
      %v710 = vsub.s32 %v709, 127
      %v711 = vand.u32 2147483647, %v586
      %v712 = vand.u32 %v711, 8388607
      %v713 = vor.u32 %v712, 8388608
      %v714 = vsub.s32 0, %v713
      %v715 = vadd.s32 %v710, 1
      %vm716 = vcmp.gt.s32.totalorder %v715, 0
      %v717 = vsel %vm716, %v715, 0
      %v718 = vshrl.u32 %v717, 5
      %v719 = vand.u32 %v717, 31
      %v720 = vsub.s32 32, %v719
      %v721 = vshrl.u32 683565275, %v720
      %v722 = vshll.u32 683565275, %v719
      %v723 = vshrl.u32 2475754826, %v720
      %v724 = vor.u32 %v722, %v723
      %v725 = vshll.u32 2475754826, %v719
      %v726 = vshrl.u32 2131351028, %v720
      %v727 = vor.u32 %v725, %v726
      %v728 = vshll.u32 2131351028, %v719
      %v729 = vshrl.u32 2102212464, %v720
      %v730 = vor.u32 %v728, %v729
      %v731 = vshll.u32 2102212464, %v719
      %v732 = vshrl.u32 920167782, %v720
      %v733 = vor.u32 %v731, %v732
      %v734 = vshll.u32 920167782, %v719
      %v735 = vshrl.u32 1326507024, %v720
      %v736 = vor.u32 %v734, %v735
      %vm737 = vcmp.lt.s32.totalorder %v718, 1
      %vm738 = vcmp.lt.s32.totalorder %v718, 2
      %vm739 = vcmp.lt.s32.totalorder %v718, 3
      %vm740 = vcmp.lt.s32.totalorder %v718, 4
      %v741 = vsel %vm737, %v721, %v724
      %v742 = vsel %vm740, %v730, 2102212464
      %v743 = vsel %vm739, %v727, %v742
      %v744 = vsel %vm738, %v741, %v743
      %v745 = vsel %vm737, %v724, %v727
      %v746 = vsel %vm740, %v733, 920167782
      %v747 = vsel %vm739, %v730, %v746
      %v748 = vsel %vm738, %v745, %v747
      %v749 = vsel %vm737, %v727, %v730
      %v750 = vsel %vm740, %v736, 1326507024
      %v751 = vsel %vm739, %v733, %v750
      %v752 = vsel %vm738, %v749, %v751
      %v753 = vshll.u32 %v713, 8
      %v754 = vmul.u32.u64.compose %v753, %v752
      %v755 = vextract.low.u32 %v754
      %v756 = vextract.high.u32 %v754
      %v757 = vmul.u32.u64.compose %v753, %v748
      %v758 = vextract.low.u32 %v757
      %v759 = vextract.high.u32 %v757
      %v760 = vmul.u32 %v753, %v744
      %v761 = vadd.s32 %v756, %v758
      %vm762 = vc.u32 %v756, %v758
      %v763 = vadd.s32 %v759, 1
      %v764 = vsel %vm762, %v763, %v759
      %v765 = vadd.s32 %v760, %v764
      %v766 = vadd.s32 %v765, 536870912
      %v767 = vshrl.u32 %v766, 30
      %v768 = vshll.u32 %v767, 30
      %v769 = vsub.s32 %v765, %v768
      %vm770 = vcmp.lt.s32.totalorder %v769, 0
      %v771 = vsub.s32 0, %v769
      %v772 = vsel %vm770, %v771, %v769
      %v773 = vclz %v772
      %v774 = vsub.s32 %v773, 2
      %vm775 = vcmp.gt.s32.totalorder 0, %v774
      %v776 = vsel %vm775, 0, %v774
      %v777 = vsub.s32 32, %v776
      %v778 = vshll.u32 %v769, %v776
      %v779 = vshrl.u32 %v761, %v777
      %v780 = vor.u32 %v778, %v779
      %v781 = vsub.s32 4294967266, %v776
      %v782 = vadd.s32 %v781, 127
      %v783 = vshll.u32 %v782, 23
      %v784 = vor.u32 4788187, %v783
      %v785 = vand.u32 2147483647, %v784
      %v787 = vcvt.s32.f32 %v780
      %v788 = vmul.f32 %v787, %v785
      %v789 = vxor.u32 %v788, 2147483648
      %v790 = vsel %vm707, %v789, %v788
      %v791 = vsub.s32 4, %v767
      %v792 = vsel %vm707, %v791, %v767
      %v793 = vsel %vm706, %v586, %v790
      %v794 = vsel %vm706, 0, %v792
      %v795 = vcosq.f32.pop %v793
      %v796 = vsinq.f32.pop %v793
      %vm797 = vweird.f32 %v586
      %v798 = vadd.s32 %v794, 3
      %v799 = vand.u32 %v798, 3
      %vm800 = vcmp.lt.s32.totalorder %v799, 2
      %vm801 = vcmp.eq.s32.totalorder %v799, 0
      %v802 = vxor.u32 %v796, 2147483648
      %v803 = vsel %vm801, %v795, %v802
      %vm804 = vcmp.eq.s32.totalorder %v799, 2
      %v805 = vxor.u32 %v795, 2147483648
      %v806 = vsel %vm804, %v805, %v796
      %v807 = vsel %vm800, %v803, %v806
      %v808 = vsel %vm797, nan, %v807
      %v809 = vand.u32 2147483647, %v587
      %vm810 = vcmp.le.f32.partialorder %v809, 0.7853982
      %vm811 = vcmp.lt.s32.totalorder %v587, 0
      %v812 = vand.u32 %v587, 2139095040
      %v813 = vshrl.u32 %v812, 23
      %v814 = vsub.s32 %v813, 127
      %v815 = vand.u32 2147483647, %v587
      %v816 = vand.u32 %v815, 8388607
      %v817 = vor.u32 %v816, 8388608
      %v818 = vsub.s32 0, %v817
      %v819 = vadd.s32 %v814, 1
      %vm820 = vcmp.gt.s32.totalorder %v819, 0
      %v821 = vsel %vm820, %v819, 0
      %v822 = vshrl.u32 %v821, 5
      %v823 = vand.u32 %v821, 31
      %v824 = vsub.s32 32, %v823
      %v825 = vshrl.u32 683565275, %v824
      %v826 = vshll.u32 683565275, %v823
      %v827 = vshrl.u32 2475754826, %v824
      %v828 = vor.u32 %v826, %v827
      %v829 = vshll.u32 2475754826, %v823
      %v830 = vshrl.u32 2131351028, %v824
      %v831 = vor.u32 %v829, %v830
      %v832 = vshll.u32 2131351028, %v823
      %v833 = vshrl.u32 2102212464, %v824
      %v834 = vor.u32 %v832, %v833
      %v835 = vshll.u32 2102212464, %v823
      %v836 = vshrl.u32 920167782, %v824
      %v837 = vor.u32 %v835, %v836
      %v838 = vshll.u32 920167782, %v823
      %v839 = vshrl.u32 1326507024, %v824
      %v840 = vor.u32 %v838, %v839
      %vm841 = vcmp.lt.s32.totalorder %v822, 1
      %vm842 = vcmp.lt.s32.totalorder %v822, 2
      %vm843 = vcmp.lt.s32.totalorder %v822, 3
      %vm844 = vcmp.lt.s32.totalorder %v822, 4
      %v845 = vsel %vm841, %v825, %v828
      %v846 = vsel %vm844, %v834, 2102212464
      %v847 = vsel %vm843, %v831, %v846
      %v848 = vsel %vm842, %v845, %v847
      %v849 = vsel %vm841, %v828, %v831
      %v850 = vsel %vm844, %v837, 920167782
      %v851 = vsel %vm843, %v834, %v850
      %v852 = vsel %vm842, %v849, %v851
      %v853 = vsel %vm841, %v831, %v834
      %v854 = vsel %vm844, %v840, 1326507024
      %v855 = vsel %vm843, %v837, %v854
      %v856 = vsel %vm842, %v853, %v855
      %v857 = vshll.u32 %v817, 8
      %v858 = vmul.u32.u64.compose %v857, %v856
      %v859 = vextract.low.u32 %v858
      %v860 = vextract.high.u32 %v858
      %v861 = vmul.u32.u64.compose %v857, %v852
      %v862 = vextract.low.u32 %v861
      %v863 = vextract.high.u32 %v861
      %v864 = vmul.u32 %v857, %v848
      %v865 = vadd.s32 %v860, %v862
      %vm866 = vc.u32 %v860, %v862
      %v867 = vadd.s32 %v863, 1
      %v868 = vsel %vm866, %v867, %v863
      %v869 = vadd.s32 %v864, %v868
      %v870 = vadd.s32 %v869, 536870912
      %v871 = vshrl.u32 %v870, 30
      %v872 = vshll.u32 %v871, 30
      %v873 = vsub.s32 %v869, %v872
      %vm874 = vcmp.lt.s32.totalorder %v873, 0
      %v875 = vsub.s32 0, %v873
      %v876 = vsel %vm874, %v875, %v873
      %v877 = vclz %v876
      %v878 = vsub.s32 %v877, 2
      %vm879 = vcmp.gt.s32.totalorder 0, %v878
      %v880 = vsel %vm879, 0, %v878
      %v881 = vsub.s32 32, %v880
      %v882 = vshll.u32 %v873, %v880
      %v883 = vshrl.u32 %v865, %v881
      %v884 = vor.u32 %v882, %v883
      %v885 = vsub.s32 4294967266, %v880
      %v886 = vadd.s32 %v885, 127
      %v887 = vshll.u32 %v886, 23
      %v888 = vor.u32 4788187, %v887
      %v889 = vand.u32 2147483647, %v888
      %v891 = vcvt.s32.f32 %v884
      %v892 = vmul.f32 %v891, %v889
      %v893 = vxor.u32 %v892, 2147483648
      %v894 = vsel %vm811, %v893, %v892
      %v895 = vsub.s32 4, %v871
      %v896 = vsel %vm811, %v895, %v871
      %v897 = vsel %vm810, %v587, %v894
      %v898 = vsel %vm810, 0, %v896
      %v899 = vcosq.f32.pop %v897
      %v900 = vsinq.f32.pop %v897
      %vm901 = vweird.f32 %v587
      %v902 = vadd.s32 %v898, 3
      %v903 = vand.u32 %v902, 3
      %vm904 = vcmp.lt.s32.totalorder %v903, 2
      %vm905 = vcmp.eq.s32.totalorder %v903, 0
      %v906 = vxor.u32 %v900, 2147483648
      %v907 = vsel %vm905, %v899, %v906
      %vm908 = vcmp.eq.s32.totalorder %v903, 2
      %v909 = vxor.u32 %v899, 2147483648
      %v910 = vsel %vm908, %v909, %v900
      %v911 = vsel %vm904, %v907, %v910
      %v912 = vsel %vm901, nan, %v911
      %v913 = vand.u32 2147483647, %v588
      %vm914 = vcmp.le.f32.partialorder %v913, 0.7853982
      %vm915 = vcmp.lt.s32.totalorder %v588, 0
      %v916 = vand.u32 %v588, 2139095040
      %v917 = vshrl.u32 %v916, 23
      %v918 = vsub.s32 %v917, 127
      %v919 = vand.u32 2147483647, %v588
      %v920 = vand.u32 %v919, 8388607
      %v921 = vor.u32 %v920, 8388608
      %v922 = vsub.s32 0, %v921
      %v923 = vadd.s32 %v918, 1
      %vm924 = vcmp.gt.s32.totalorder %v923, 0
      %v925 = vsel %vm924, %v923, 0
      %v926 = vshrl.u32 %v925, 5
      %v927 = vand.u32 %v925, 31
      %v928 = vsub.s32 32, %v927
      %v929 = vshrl.u32 683565275, %v928
      %v930 = vshll.u32 683565275, %v927
      %v931 = vshrl.u32 2475754826, %v928
      %v932 = vor.u32 %v930, %v931
      %v933 = vshll.u32 2475754826, %v927
      %v934 = vshrl.u32 2131351028, %v928
      %v935 = vor.u32 %v933, %v934
      %v936 = vshll.u32 2131351028, %v927
      %v937 = vshrl.u32 2102212464, %v928
      %v938 = vor.u32 %v936, %v937
      %v939 = vshll.u32 2102212464, %v927
      %v940 = vshrl.u32 920167782, %v928
      %v941 = vor.u32 %v939, %v940
      %v942 = vshll.u32 920167782, %v927
      %v943 = vshrl.u32 1326507024, %v928
      %v944 = vor.u32 %v942, %v943
      %vm945 = vcmp.lt.s32.totalorder %v926, 1
      %vm946 = vcmp.lt.s32.totalorder %v926, 2
      %vm947 = vcmp.lt.s32.totalorder %v926, 3
      %vm948 = vcmp.lt.s32.totalorder %v926, 4
      %v949 = vsel %vm945, %v929, %v932
      %v950 = vsel %vm948, %v938, 2102212464
      %v951 = vsel %vm947, %v935, %v950
      %v952 = vsel %vm946, %v949, %v951
      %v953 = vsel %vm945, %v932, %v935
      %v954 = vsel %vm948, %v941, 920167782
      %v955 = vsel %vm947, %v938, %v954
      %v956 = vsel %vm946, %v953, %v955
      %v957 = vsel %vm945, %v935, %v938
      %v958 = vsel %vm948, %v944, 1326507024
      %v959 = vsel %vm947, %v941, %v958
      %v960 = vsel %vm946, %v957, %v959
      %v961 = vshll.u32 %v921, 8
      %v962 = vmul.u32.u64.compose %v961, %v960
      %v963 = vextract.low.u32 %v962
      %v964 = vextract.high.u32 %v962
      %v965 = vmul.u32.u64.compose %v961, %v956
      %v966 = vextract.low.u32 %v965
      %v967 = vextract.high.u32 %v965
      %v968 = vmul.u32 %v961, %v952
      %v969 = vadd.s32 %v964, %v966
      %vm970 = vc.u32 %v964, %v966
      %v971 = vadd.s32 %v967, 1
      %v972 = vsel %vm970, %v971, %v967
      %v973 = vadd.s32 %v968, %v972
      %v974 = vadd.s32 %v973, 536870912
      %v975 = vshrl.u32 %v974, 30
      %v976 = vshll.u32 %v975, 30
      %v977 = vsub.s32 %v973, %v976
      %vm978 = vcmp.lt.s32.totalorder %v977, 0
      %v979 = vsub.s32 0, %v977
      %v980 = vsel %vm978, %v979, %v977
      %v981 = vclz %v980
      %v982 = vsub.s32 %v981, 2
      %vm983 = vcmp.gt.s32.totalorder 0, %v982
      %v984 = vsel %vm983, 0, %v982
      %v985 = vsub.s32 32, %v984
      %v986 = vshll.u32 %v977, %v984
      %v987 = vshrl.u32 %v969, %v985
      %v988 = vor.u32 %v986, %v987
      %v989 = vsub.s32 4294967266, %v984
      %v990 = vadd.s32 %v989, 127
      %v991 = vshll.u32 %v990, 23
      %v992 = vor.u32 4788187, %v991
      %v993 = vand.u32 2147483647, %v992
      %v995 = vcvt.s32.f32 %v988
      %v996 = vmul.f32 %v995, %v993
      %v997 = vxor.u32 %v996, 2147483648
      %v998 = vsel %vm915, %v997, %v996
      %v999 = vsub.s32 4, %v975
      %v1000 = vsel %vm915, %v999, %v975
      %v1001 = vsel %vm914, %v588, %v998
      %v1002 = vsel %vm914, 0, %v1000
      %v1003 = vcosq.f32.pop %v1001
      %v1004 = vsinq.f32.pop %v1001
      %vm1005 = vweird.f32 %v588
      %v1006 = vadd.s32 %v1002, 3
      %v1007 = vand.u32 %v1006, 3
      %vm1008 = vcmp.lt.s32.totalorder %v1007, 2
      %vm1009 = vcmp.eq.s32.totalorder %v1007, 0
      %v1010 = vxor.u32 %v1004, 2147483648
      %v1011 = vsel %vm1009, %v1003, %v1010
      %vm1012 = vcmp.eq.s32.totalorder %v1007, 2
      %v1013 = vxor.u32 %v1003, 2147483648
      %v1014 = vsel %vm1012, %v1013, %v1004
      %v1015 = vsel %vm1008, %v1011, %v1014
      %v1016 = vsel %vm1005, nan, %v1015
      %v1017 = vand.u32 2147483647, %v589
      %vm1018 = vcmp.le.f32.partialorder %v1017, 0.7853982
      %vm1019 = vcmp.lt.s32.totalorder %v589, 0
      %v1020 = vand.u32 %v589, 2139095040
      %v1021 = vshrl.u32 %v1020, 23
      %v1022 = vsub.s32 %v1021, 127
      %v1023 = vand.u32 2147483647, %v589
      %v1024 = vand.u32 %v1023, 8388607
      %v1025 = vor.u32 %v1024, 8388608
      %v1026 = vsub.s32 0, %v1025
      %v1027 = vadd.s32 %v1022, 1
      %vm1028 = vcmp.gt.s32.totalorder %v1027, 0
      %v1029 = vsel %vm1028, %v1027, 0
      %v1030 = vshrl.u32 %v1029, 5
      %v1031 = vand.u32 %v1029, 31
      %v1032 = vsub.s32 32, %v1031
      %v1033 = vshrl.u32 683565275, %v1032
      %v1034 = vshll.u32 683565275, %v1031
      %v1035 = vshrl.u32 2475754826, %v1032
      %v1036 = vor.u32 %v1034, %v1035
      %v1037 = vshll.u32 2475754826, %v1031
      %v1038 = vshrl.u32 2131351028, %v1032
      %v1039 = vor.u32 %v1037, %v1038
      %v1040 = vshll.u32 2131351028, %v1031
      %v1041 = vshrl.u32 2102212464, %v1032
      %v1042 = vor.u32 %v1040, %v1041
      %v1043 = vshll.u32 2102212464, %v1031
      %v1044 = vshrl.u32 920167782, %v1032
      %v1045 = vor.u32 %v1043, %v1044
      %v1046 = vshll.u32 920167782, %v1031
      %v1047 = vshrl.u32 1326507024, %v1032
      %v1048 = vor.u32 %v1046, %v1047
      %vm1049 = vcmp.lt.s32.totalorder %v1030, 1
      %vm1050 = vcmp.lt.s32.totalorder %v1030, 2
      %vm1051 = vcmp.lt.s32.totalorder %v1030, 3
      %vm1052 = vcmp.lt.s32.totalorder %v1030, 4
      %v1053 = vsel %vm1049, %v1033, %v1036
      %v1054 = vsel %vm1052, %v1042, 2102212464
      %v1055 = vsel %vm1051, %v1039, %v1054
      %v1056 = vsel %vm1050, %v1053, %v1055
      %v1057 = vsel %vm1049, %v1036, %v1039
      %v1058 = vsel %vm1052, %v1045, 920167782
      %v1059 = vsel %vm1051, %v1042, %v1058
      %v1060 = vsel %vm1050, %v1057, %v1059
      %v1061 = vsel %vm1049, %v1039, %v1042
      %v1062 = vsel %vm1052, %v1048, 1326507024
      %v1063 = vsel %vm1051, %v1045, %v1062
      %v1064 = vsel %vm1050, %v1061, %v1063
      %v1065 = vshll.u32 %v1025, 8
      %v1066 = vmul.u32.u64.compose %v1065, %v1064
      %v1067 = vextract.low.u32 %v1066
      %v1068 = vextract.high.u32 %v1066
      %v1069 = vmul.u32.u64.compose %v1065, %v1060
      %v1070 = vextract.low.u32 %v1069
      %v1071 = vextract.high.u32 %v1069
      %v1072 = vmul.u32 %v1065, %v1056
      %v1073 = vadd.s32 %v1068, %v1070
      %vm1074 = vc.u32 %v1068, %v1070
      %v1075 = vadd.s32 %v1071, 1
      %v1076 = vsel %vm1074, %v1075, %v1071
      %v1077 = vadd.s32 %v1072, %v1076
      %v1078 = vadd.s32 %v1077, 536870912
      %v1079 = vshrl.u32 %v1078, 30
      %v1080 = vshll.u32 %v1079, 30
      %v1081 = vsub.s32 %v1077, %v1080
      %vm1082 = vcmp.lt.s32.totalorder %v1081, 0
      %v1083 = vsub.s32 0, %v1081
      %v1084 = vsel %vm1082, %v1083, %v1081
      %v1085 = vclz %v1084
      %v1086 = vsub.s32 %v1085, 2
      %vm1087 = vcmp.gt.s32.totalorder 0, %v1086
      %v1088 = vsel %vm1087, 0, %v1086
      %v1089 = vsub.s32 32, %v1088
      %v1090 = vshll.u32 %v1081, %v1088
      %v1091 = vshrl.u32 %v1073, %v1089
      %v1092 = vor.u32 %v1090, %v1091
      %v1093 = vsub.s32 4294967266, %v1088
      %v1094 = vadd.s32 %v1093, 127
      %v1095 = vshll.u32 %v1094, 23
      %v1096 = vor.u32 4788187, %v1095
      %v1097 = vand.u32 2147483647, %v1096
      %v1099 = vcvt.s32.f32 %v1092
      %v1100 = vmul.f32 %v1099, %v1097
      %v1101 = vxor.u32 %v1100, 2147483648
      %v1102 = vsel %vm1019, %v1101, %v1100
      %v1103 = vsub.s32 4, %v1079
      %v1104 = vsel %vm1019, %v1103, %v1079
      %v1105 = vsel %vm1018, %v589, %v1102
      %v1106 = vsel %vm1018, 0, %v1104
      %v1107 = vcosq.f32.pop %v1105
      %v1108 = vsinq.f32.pop %v1105
      %vm1109 = vweird.f32 %v589
      %v1110 = vadd.s32 %v1106, 3
      %v1111 = vand.u32 %v1110, 3
      %vm1112 = vcmp.lt.s32.totalorder %v1111, 2
      %vm1113 = vcmp.eq.s32.totalorder %v1111, 0
      %v1114 = vxor.u32 %v1108, 2147483648
      %v1115 = vsel %vm1113, %v1107, %v1114
      %vm1116 = vcmp.eq.s32.totalorder %v1111, 2
      %v1117 = vxor.u32 %v1107, 2147483648
      %v1118 = vsel %vm1116, %v1117, %v1108
      %v1119 = vsel %vm1112, %v1115, %v1118
      %v1120 = vsel %vm1109, nan, %v1119
      %v1121 = vand.u32 2147483647, %v590
      %vm1122 = vcmp.le.f32.partialorder %v1121, 0.7853982
      %vm1123 = vcmp.lt.s32.totalorder %v590, 0
      %v1124 = vand.u32 %v590, 2139095040
      %v1125 = vshrl.u32 %v1124, 23
      %v1126 = vsub.s32 %v1125, 127
      %v1127 = vand.u32 2147483647, %v590
      %v1128 = vand.u32 %v1127, 8388607
      %v1129 = vor.u32 %v1128, 8388608
      %v1130 = vsub.s32 0, %v1129
      %v1131 = vadd.s32 %v1126, 1
      %vm1132 = vcmp.gt.s32.totalorder %v1131, 0
      %v1133 = vsel %vm1132, %v1131, 0
      %v1134 = vshrl.u32 %v1133, 5
      %v1135 = vand.u32 %v1133, 31
      %v1136 = vsub.s32 32, %v1135
      %v1137 = vshrl.u32 683565275, %v1136
      %v1138 = vshll.u32 683565275, %v1135
      %v1139 = vshrl.u32 2475754826, %v1136
      %v1140 = vor.u32 %v1138, %v1139
      %v1141 = vshll.u32 2475754826, %v1135
      %v1142 = vshrl.u32 2131351028, %v1136
      %v1143 = vor.u32 %v1141, %v1142
      %v1144 = vshll.u32 2131351028, %v1135
      %v1145 = vshrl.u32 2102212464, %v1136
      %v1146 = vor.u32 %v1144, %v1145
      %v1147 = vshll.u32 2102212464, %v1135
      %v1148 = vshrl.u32 920167782, %v1136
      %v1149 = vor.u32 %v1147, %v1148
      %v1150 = vshll.u32 920167782, %v1135
      %v1151 = vshrl.u32 1326507024, %v1136
      %v1152 = vor.u32 %v1150, %v1151
      %vm1153 = vcmp.lt.s32.totalorder %v1134, 1
      %vm1154 = vcmp.lt.s32.totalorder %v1134, 2
      %vm1155 = vcmp.lt.s32.totalorder %v1134, 3
      %vm1156 = vcmp.lt.s32.totalorder %v1134, 4
      %v1157 = vsel %vm1153, %v1137, %v1140
      %v1158 = vsel %vm1156, %v1146, 2102212464
      %v1159 = vsel %vm1155, %v1143, %v1158
      %v1160 = vsel %vm1154, %v1157, %v1159
      %v1161 = vsel %vm1153, %v1140, %v1143
      %v1162 = vsel %vm1156, %v1149, 920167782
      %v1163 = vsel %vm1155, %v1146, %v1162
      %v1164 = vsel %vm1154, %v1161, %v1163
      %v1165 = vsel %vm1153, %v1143, %v1146
      %v1166 = vsel %vm1156, %v1152, 1326507024
      %v1167 = vsel %vm1155, %v1149, %v1166
      %v1168 = vsel %vm1154, %v1165, %v1167
      %v1169 = vshll.u32 %v1129, 8
      %v1170 = vmul.u32.u64.compose %v1169, %v1168
      %v1171 = vextract.low.u32 %v1170
      %v1172 = vextract.high.u32 %v1170
      %v1173 = vmul.u32.u64.compose %v1169, %v1164
      %v1174 = vextract.low.u32 %v1173
      %v1175 = vextract.high.u32 %v1173
      %v1176 = vmul.u32 %v1169, %v1160
      %v1177 = vadd.s32 %v1172, %v1174
      %vm1178 = vc.u32 %v1172, %v1174
      %v1179 = vadd.s32 %v1175, 1
      %v1180 = vsel %vm1178, %v1179, %v1175
      %v1181 = vadd.s32 %v1176, %v1180
      %v1182 = vadd.s32 %v1181, 536870912
      %v1183 = vshrl.u32 %v1182, 30
      %v1184 = vshll.u32 %v1183, 30
      %v1185 = vsub.s32 %v1181, %v1184
      %vm1186 = vcmp.lt.s32.totalorder %v1185, 0
      %v1187 = vsub.s32 0, %v1185
      %v1188 = vsel %vm1186, %v1187, %v1185
      %v1189 = vclz %v1188
      %v1190 = vsub.s32 %v1189, 2
      %vm1191 = vcmp.gt.s32.totalorder 0, %v1190
      %v1192 = vsel %vm1191, 0, %v1190
      %v1193 = vsub.s32 32, %v1192
      %v1194 = vshll.u32 %v1185, %v1192
      %v1195 = vshrl.u32 %v1177, %v1193
      %v1196 = vor.u32 %v1194, %v1195
      %v1197 = vsub.s32 4294967266, %v1192
      %v1198 = vadd.s32 %v1197, 127
      %v1199 = vshll.u32 %v1198, 23
      %v1200 = vor.u32 4788187, %v1199
      %v1201 = vand.u32 2147483647, %v1200
      %v1203 = vcvt.s32.f32 %v1196
      %v1204 = vmul.f32 %v1203, %v1201
      %v1205 = vxor.u32 %v1204, 2147483648
      %v1206 = vsel %vm1123, %v1205, %v1204
      %v1207 = vsub.s32 4, %v1183
      %v1208 = vsel %vm1123, %v1207, %v1183
      %v1209 = vsel %vm1122, %v590, %v1206
      %v1210 = vsel %vm1122, 0, %v1208
      %v1211 = vcosq.f32.pop %v1209
      %v1212 = vsinq.f32.pop %v1209
      %vm1213 = vweird.f32 %v590
      %v1214 = vadd.s32 %v1210, 3
      %v1215 = vand.u32 %v1214, 3
      %vm1216 = vcmp.lt.s32.totalorder %v1215, 2
      %vm1217 = vcmp.eq.s32.totalorder %v1215, 0
      %v1218 = vxor.u32 %v1212, 2147483648
      %v1219 = vsel %vm1217, %v1211, %v1218
      %vm1220 = vcmp.eq.s32.totalorder %v1215, 2
      %v1221 = vxor.u32 %v1211, 2147483648
      %v1222 = vsel %vm1220, %v1221, %v1212
      %v1223 = vsel %vm1216, %v1219, %v1222
      %v1224 = vsel %vm1213, nan, %v1223
      %v1225 = vand.u32 2147483647, %v591
      %vm1226 = vcmp.le.f32.partialorder %v1225, 0.7853982
      %vm1227 = vcmp.lt.s32.totalorder %v591, 0
      %v1228 = vand.u32 %v591, 2139095040
      %v1229 = vshrl.u32 %v1228, 23
      %v1230 = vsub.s32 %v1229, 127
      %v1231 = vand.u32 2147483647, %v591
      %v1232 = vand.u32 %v1231, 8388607
      %v1233 = vor.u32 %v1232, 8388608
      %v1234 = vsub.s32 0, %v1233
      %v1235 = vadd.s32 %v1230, 1
      %vm1236 = vcmp.gt.s32.totalorder %v1235, 0
      %v1237 = vsel %vm1236, %v1235, 0
      %v1238 = vshrl.u32 %v1237, 5
      %v1239 = vand.u32 %v1237, 31
      %v1240 = vsub.s32 32, %v1239
      %v1241 = vshrl.u32 683565275, %v1240
      %v1242 = vshll.u32 683565275, %v1239
      %v1243 = vshrl.u32 2475754826, %v1240
      %v1244 = vor.u32 %v1242, %v1243
      %v1245 = vshll.u32 2475754826, %v1239
      %v1246 = vshrl.u32 2131351028, %v1240
      %v1247 = vor.u32 %v1245, %v1246
      %v1248 = vshll.u32 2131351028, %v1239
      %v1249 = vshrl.u32 2102212464, %v1240
      %v1250 = vor.u32 %v1248, %v1249
      %v1251 = vshll.u32 2102212464, %v1239
      %v1252 = vshrl.u32 920167782, %v1240
      %v1253 = vor.u32 %v1251, %v1252
      %v1254 = vshll.u32 920167782, %v1239
      %v1255 = vshrl.u32 1326507024, %v1240
      %v1256 = vor.u32 %v1254, %v1255
      %vm1257 = vcmp.lt.s32.totalorder %v1238, 1
      %vm1258 = vcmp.lt.s32.totalorder %v1238, 2
      %vm1259 = vcmp.lt.s32.totalorder %v1238, 3
      %vm1260 = vcmp.lt.s32.totalorder %v1238, 4
      %v1261 = vsel %vm1257, %v1241, %v1244
      %v1262 = vsel %vm1260, %v1250, 2102212464
      %v1263 = vsel %vm1259, %v1247, %v1262
      %v1264 = vsel %vm1258, %v1261, %v1263
      %v1265 = vsel %vm1257, %v1244, %v1247
      %v1266 = vsel %vm1260, %v1253, 920167782
      %v1267 = vsel %vm1259, %v1250, %v1266
      %v1268 = vsel %vm1258, %v1265, %v1267
      %v1269 = vsel %vm1257, %v1247, %v1250
      %v1270 = vsel %vm1260, %v1256, 1326507024
      %v1271 = vsel %vm1259, %v1253, %v1270
      %v1272 = vsel %vm1258, %v1269, %v1271
      %v1273 = vshll.u32 %v1233, 8
      %v1274 = vmul.u32.u64.compose %v1273, %v1272
      %v1275 = vextract.low.u32 %v1274
      %v1276 = vextract.high.u32 %v1274
      %v1277 = vmul.u32.u64.compose %v1273, %v1268
      %v1278 = vextract.low.u32 %v1277
      %v1279 = vextract.high.u32 %v1277
      %v1280 = vmul.u32 %v1273, %v1264
      %v1281 = vadd.s32 %v1276, %v1278
      %vm1282 = vc.u32 %v1276, %v1278
      %v1283 = vadd.s32 %v1279, 1
      %v1284 = vsel %vm1282, %v1283, %v1279
      %v1285 = vadd.s32 %v1280, %v1284
      %v1286 = vadd.s32 %v1285, 536870912
      %v1287 = vshrl.u32 %v1286, 30
      %v1288 = vshll.u32 %v1287, 30
      %v1289 = vsub.s32 %v1285, %v1288
      %vm1290 = vcmp.lt.s32.totalorder %v1289, 0
      %v1291 = vsub.s32 0, %v1289
      %v1292 = vsel %vm1290, %v1291, %v1289
      %v1293 = vclz %v1292
      %v1294 = vsub.s32 %v1293, 2
      %vm1295 = vcmp.gt.s32.totalorder 0, %v1294
      %v1296 = vsel %vm1295, 0, %v1294
      %v1297 = vsub.s32 32, %v1296
      %v1298 = vshll.u32 %v1289, %v1296
      %v1299 = vshrl.u32 %v1281, %v1297
      %v1300 = vor.u32 %v1298, %v1299
      %v1301 = vsub.s32 4294967266, %v1296
      %v1302 = vadd.s32 %v1301, 127
      %v1303 = vshll.u32 %v1302, 23
      %v1304 = vor.u32 4788187, %v1303
      %v1305 = vand.u32 2147483647, %v1304
      %v1307 = vcvt.s32.f32 %v1300
      %v1308 = vmul.f32 %v1307, %v1305
      %v1309 = vxor.u32 %v1308, 2147483648
      %v1310 = vsel %vm1227, %v1309, %v1308
      %v1311 = vsub.s32 4, %v1287
      %v1312 = vsel %vm1227, %v1311, %v1287
      %v1313 = vsel %vm1226, %v591, %v1310
      %v1314 = vsel %vm1226, 0, %v1312
      %v1315 = vcosq.f32.pop %v1313
      %v1316 = vsinq.f32.pop %v1313
      %vm1317 = vweird.f32 %v591
      %v1318 = vadd.s32 %v1314, 3
      %v1319 = vand.u32 %v1318, 3
      %vm1320 = vcmp.lt.s32.totalorder %v1319, 2
      %vm1321 = vcmp.eq.s32.totalorder %v1319, 0
      %v1322 = vxor.u32 %v1316, 2147483648
      %v1323 = vsel %vm1321, %v1315, %v1322
      %vm1324 = vcmp.eq.s32.totalorder %v1319, 2
      %v1325 = vxor.u32 %v1315, 2147483648
      %v1326 = vsel %vm1324, %v1325, %v1316
      %v1327 = vsel %vm1320, %v1323, %v1326
      %v1328 = vsel %vm1317, nan, %v1327
      %v1329 = vand.u32 2147483647, %v592
      %vm1330 = vcmp.le.f32.partialorder %v1329, 0.7853982
      %vm1331 = vcmp.lt.s32.totalorder %v592, 0
      %v1332 = vand.u32 %v592, 2139095040
      %v1333 = vshrl.u32 %v1332, 23
      %v1334 = vsub.s32 %v1333, 127
      %v1335 = vand.u32 2147483647, %v592
      %v1336 = vand.u32 %v1335, 8388607
      %v1337 = vor.u32 %v1336, 8388608
      %v1338 = vsub.s32 0, %v1337
      %v1339 = vadd.s32 %v1334, 1
      %vm1340 = vcmp.gt.s32.totalorder %v1339, 0
      %v1341 = vsel %vm1340, %v1339, 0
      %v1342 = vshrl.u32 %v1341, 5
      %v1343 = vand.u32 %v1341, 31
      %v1344 = vsub.s32 32, %v1343
      %v1345 = vshrl.u32 683565275, %v1344
      %v1346 = vshll.u32 683565275, %v1343
      %v1347 = vshrl.u32 2475754826, %v1344
      %v1348 = vor.u32 %v1346, %v1347
      %v1349 = vshll.u32 2475754826, %v1343
      %v1350 = vshrl.u32 2131351028, %v1344
      %v1351 = vor.u32 %v1349, %v1350
      %v1352 = vshll.u32 2131351028, %v1343
      %v1353 = vshrl.u32 2102212464, %v1344
      %v1354 = vor.u32 %v1352, %v1353
      %v1355 = vshll.u32 2102212464, %v1343
      %v1356 = vshrl.u32 920167782, %v1344
      %v1357 = vor.u32 %v1355, %v1356
      %v1358 = vshll.u32 920167782, %v1343
      %v1359 = vshrl.u32 1326507024, %v1344
      %v1360 = vor.u32 %v1358, %v1359
      %vm1361 = vcmp.lt.s32.totalorder %v1342, 1
      %vm1362 = vcmp.lt.s32.totalorder %v1342, 2
      %vm1363 = vcmp.lt.s32.totalorder %v1342, 3
      %vm1364 = vcmp.lt.s32.totalorder %v1342, 4
      %v1365 = vsel %vm1361, %v1345, %v1348
      %v1366 = vsel %vm1364, %v1354, 2102212464
      %v1367 = vsel %vm1363, %v1351, %v1366
      %v1368 = vsel %vm1362, %v1365, %v1367
      %v1369 = vsel %vm1361, %v1348, %v1351
      %v1370 = vsel %vm1364, %v1357, 920167782
      %v1371 = vsel %vm1363, %v1354, %v1370
      %v1372 = vsel %vm1362, %v1369, %v1371
      %v1373 = vsel %vm1361, %v1351, %v1354
      %v1374 = vsel %vm1364, %v1360, 1326507024
      %v1375 = vsel %vm1363, %v1357, %v1374
      %v1376 = vsel %vm1362, %v1373, %v1375
      %v1377 = vshll.u32 %v1337, 8
      %v1378 = vmul.u32.u64.compose %v1377, %v1376
      %v1379 = vextract.low.u32 %v1378
      %v1380 = vextract.high.u32 %v1378
      %v1381 = vmul.u32.u64.compose %v1377, %v1372
      %v1382 = vextract.low.u32 %v1381
      %v1383 = vextract.high.u32 %v1381
      %v1384 = vmul.u32 %v1377, %v1368
      %v1385 = vadd.s32 %v1380, %v1382
      %vm1386 = vc.u32 %v1380, %v1382
      %v1387 = vadd.s32 %v1383, 1
      %v1388 = vsel %vm1386, %v1387, %v1383
      %v1389 = vadd.s32 %v1384, %v1388
      %v1390 = vadd.s32 %v1389, 536870912
      %v1391 = vshrl.u32 %v1390, 30
      %v1392 = vshll.u32 %v1391, 30
      %v1393 = vsub.s32 %v1389, %v1392
      %vm1394 = vcmp.lt.s32.totalorder %v1393, 0
      %v1395 = vsub.s32 0, %v1393
      %v1396 = vsel %vm1394, %v1395, %v1393
      %v1397 = vclz %v1396
      %v1398 = vsub.s32 %v1397, 2
      %vm1399 = vcmp.gt.s32.totalorder 0, %v1398
      %v1400 = vsel %vm1399, 0, %v1398
      %v1401 = vsub.s32 32, %v1400
      %v1402 = vshll.u32 %v1393, %v1400
      %v1403 = vshrl.u32 %v1385, %v1401
      %v1404 = vor.u32 %v1402, %v1403
      %v1405 = vsub.s32 4294967266, %v1400
      %v1406 = vadd.s32 %v1405, 127
      %v1407 = vshll.u32 %v1406, 23
      %v1408 = vor.u32 4788187, %v1407
      %v1409 = vand.u32 2147483647, %v1408
      %v1411 = vcvt.s32.f32 %v1404
      %v1412 = vmul.f32 %v1411, %v1409
      %v1413 = vxor.u32 %v1412, 2147483648
      %v1414 = vsel %vm1331, %v1413, %v1412
      %v1415 = vsub.s32 4, %v1391
      %v1416 = vsel %vm1331, %v1415, %v1391
      %v1417 = vsel %vm1330, %v592, %v1414
      %v1418 = vsel %vm1330, 0, %v1416
      %v1419 = vcosq.f32.pop %v1417
      %v1420 = vsinq.f32.pop %v1417
      %vm1421 = vweird.f32 %v592
      %v1422 = vadd.s32 %v1418, 3
      %v1423 = vand.u32 %v1422, 3
      %vm1424 = vcmp.lt.s32.totalorder %v1423, 2
      %vm1425 = vcmp.eq.s32.totalorder %v1423, 0
      %v1426 = vxor.u32 %v1420, 2147483648
      %v1427 = vsel %vm1425, %v1419, %v1426
      %vm1428 = vcmp.eq.s32.totalorder %v1423, 2
      %v1429 = vxor.u32 %v1419, 2147483648
      %v1430 = vsel %vm1428, %v1429, %v1420
      %v1431 = vsel %vm1424, %v1427, %v1430
      %v1432 = vsel %vm1421, nan, %v1431
      %v1433 = vand.u32 2147483647, %v593
      %vm1434 = vcmp.le.f32.partialorder %v1433, 0.7853982
      %vm1435 = vcmp.lt.s32.totalorder %v593, 0
      %v1436 = vand.u32 %v593, 2139095040
      %v1437 = vshrl.u32 %v1436, 23
      %v1438 = vsub.s32 %v1437, 127
      %v1439 = vand.u32 2147483647, %v593
      %v1440 = vand.u32 %v1439, 8388607
      %v1441 = vor.u32 %v1440, 8388608
      %v1442 = vsub.s32 0, %v1441
      %v1443 = vadd.s32 %v1438, 1
      %vm1444 = vcmp.gt.s32.totalorder %v1443, 0
      %v1445 = vsel %vm1444, %v1443, 0
      %v1446 = vshrl.u32 %v1445, 5
      %v1447 = vand.u32 %v1445, 31
      %v1448 = vsub.s32 32, %v1447
      %v1449 = vshrl.u32 683565275, %v1448
      %v1450 = vshll.u32 683565275, %v1447
      %v1451 = vshrl.u32 2475754826, %v1448
      %v1452 = vor.u32 %v1450, %v1451
      %v1453 = vshll.u32 2475754826, %v1447
      %v1454 = vshrl.u32 2131351028, %v1448
      %v1455 = vor.u32 %v1453, %v1454
      %v1456 = vshll.u32 2131351028, %v1447
      %v1457 = vshrl.u32 2102212464, %v1448
      %v1458 = vor.u32 %v1456, %v1457
      %v1459 = vshll.u32 2102212464, %v1447
      %v1460 = vshrl.u32 920167782, %v1448
      %v1461 = vor.u32 %v1459, %v1460
      %v1462 = vshll.u32 920167782, %v1447
      %v1463 = vshrl.u32 1326507024, %v1448
      %v1464 = vor.u32 %v1462, %v1463
      %vm1465 = vcmp.lt.s32.totalorder %v1446, 1
      %vm1466 = vcmp.lt.s32.totalorder %v1446, 2
      %vm1467 = vcmp.lt.s32.totalorder %v1446, 3
      %vm1468 = vcmp.lt.s32.totalorder %v1446, 4
      %v1469 = vsel %vm1465, %v1449, %v1452
      %v1470 = vsel %vm1468, %v1458, 2102212464
      %v1471 = vsel %vm1467, %v1455, %v1470
      %v1472 = vsel %vm1466, %v1469, %v1471
      %v1473 = vsel %vm1465, %v1452, %v1455
      %v1474 = vsel %vm1468, %v1461, 920167782
      %v1475 = vsel %vm1467, %v1458, %v1474
      %v1476 = vsel %vm1466, %v1473, %v1475
      %v1477 = vsel %vm1465, %v1455, %v1458
      %v1478 = vsel %vm1468, %v1464, 1326507024
      %v1479 = vsel %vm1467, %v1461, %v1478
      %v1480 = vsel %vm1466, %v1477, %v1479
      %v1481 = vshll.u32 %v1441, 8
      %v1482 = vmul.u32.u64.compose %v1481, %v1480
      %v1483 = vextract.low.u32 %v1482
      %v1484 = vextract.high.u32 %v1482
      %v1485 = vmul.u32.u64.compose %v1481, %v1476
      %v1486 = vextract.low.u32 %v1485
      %v1487 = vextract.high.u32 %v1485
      %v1488 = vmul.u32 %v1481, %v1472
      %v1489 = vadd.s32 %v1484, %v1486
      %vm1490 = vc.u32 %v1484, %v1486
      %v1491 = vadd.s32 %v1487, 1
      %v1492 = vsel %vm1490, %v1491, %v1487
      %v1493 = vadd.s32 %v1488, %v1492
      %v1494 = vadd.s32 %v1493, 536870912
      %v1495 = vshrl.u32 %v1494, 30
      %v1496 = vshll.u32 %v1495, 30
      %v1497 = vsub.s32 %v1493, %v1496
      %vm1498 = vcmp.lt.s32.totalorder %v1497, 0
      %v1499 = vsub.s32 0, %v1497
      %v1500 = vsel %vm1498, %v1499, %v1497
      %v1501 = vclz %v1500
      %v1502 = vsub.s32 %v1501, 2
      %vm1503 = vcmp.gt.s32.totalorder 0, %v1502
      %v1504 = vsel %vm1503, 0, %v1502
      %v1505 = vsub.s32 32, %v1504
      %v1506 = vshll.u32 %v1497, %v1504
      %v1507 = vshrl.u32 %v1489, %v1505
      %v1508 = vor.u32 %v1506, %v1507
      %v1509 = vsub.s32 4294967266, %v1504
      %v1510 = vadd.s32 %v1509, 127
      %v1511 = vshll.u32 %v1510, 23
      %v1512 = vor.u32 4788187, %v1511
      %v1513 = vand.u32 2147483647, %v1512
      %v1515 = vcvt.s32.f32 %v1508
      %v1516 = vmul.f32 %v1515, %v1513
      %v1517 = vxor.u32 %v1516, 2147483648
      %v1518 = vsel %vm1435, %v1517, %v1516
      %v1519 = vsub.s32 4, %v1495
      %v1520 = vsel %vm1435, %v1519, %v1495
      %v1521 = vsel %vm1434, %v593, %v1518
      %v1522 = vsel %vm1434, 0, %v1520
      %v1523 = vcosq.f32.pop %v1521
      %v1524 = vsinq.f32.pop %v1521
      %vm1525 = vweird.f32 %v593
      %v1526 = vadd.s32 %v1522, 3
      %v1527 = vand.u32 %v1526, 3
      %vm1528 = vcmp.lt.s32.totalorder %v1527, 2
      %vm1529 = vcmp.eq.s32.totalorder %v1527, 0
      %v1530 = vxor.u32 %v1524, 2147483648
      %v1531 = vsel %vm1529, %v1523, %v1530
      %vm1532 = vcmp.eq.s32.totalorder %v1527, 2
      %v1533 = vxor.u32 %v1523, 2147483648
      %v1534 = vsel %vm1532, %v1533, %v1524
      %v1535 = vsel %vm1528, %v1531, %v1534
      %v1536 = vsel %vm1525, nan, %v1535
      %v1537 = vand.u32 2147483647, %v594
      %vm1538 = vcmp.le.f32.partialorder %v1537, 0.7853982
      %vm1539 = vcmp.lt.s32.totalorder %v594, 0
      %v1540 = vand.u32 %v594, 2139095040
      %v1541 = vshrl.u32 %v1540, 23
      %v1542 = vsub.s32 %v1541, 127
      %v1543 = vand.u32 2147483647, %v594
      %v1544 = vand.u32 %v1543, 8388607
      %v1545 = vor.u32 %v1544, 8388608
      %v1546 = vsub.s32 0, %v1545
      %v1547 = vadd.s32 %v1542, 1
      %vm1548 = vcmp.gt.s32.totalorder %v1547, 0
      %v1549 = vsel %vm1548, %v1547, 0
      %v1550 = vshrl.u32 %v1549, 5
      %v1551 = vand.u32 %v1549, 31
      %v1552 = vsub.s32 32, %v1551
      %v1553 = vshrl.u32 683565275, %v1552
      %v1554 = vshll.u32 683565275, %v1551
      %v1555 = vshrl.u32 2475754826, %v1552
      %v1556 = vor.u32 %v1554, %v1555
      %v1557 = vshll.u32 2475754826, %v1551
      %v1558 = vshrl.u32 2131351028, %v1552
      %v1559 = vor.u32 %v1557, %v1558
      %v1560 = vshll.u32 2131351028, %v1551
      %v1561 = vshrl.u32 2102212464, %v1552
      %v1562 = vor.u32 %v1560, %v1561
      %v1563 = vshll.u32 2102212464, %v1551
      %v1564 = vshrl.u32 920167782, %v1552
      %v1565 = vor.u32 %v1563, %v1564
      %v1566 = vshll.u32 920167782, %v1551
      %v1567 = vshrl.u32 1326507024, %v1552
      %v1568 = vor.u32 %v1566, %v1567
      %vm1569 = vcmp.lt.s32.totalorder %v1550, 1
      %vm1570 = vcmp.lt.s32.totalorder %v1550, 2
      %vm1571 = vcmp.lt.s32.totalorder %v1550, 3
      %vm1572 = vcmp.lt.s32.totalorder %v1550, 4
      %v1573 = vsel %vm1569, %v1553, %v1556
      %v1574 = vsel %vm1572, %v1562, 2102212464
      %v1575 = vsel %vm1571, %v1559, %v1574
      %v1576 = vsel %vm1570, %v1573, %v1575
      %v1577 = vsel %vm1569, %v1556, %v1559
      %v1578 = vsel %vm1572, %v1565, 920167782
      %v1579 = vsel %vm1571, %v1562, %v1578
      %v1580 = vsel %vm1570, %v1577, %v1579
      %v1581 = vsel %vm1569, %v1559, %v1562
      %v1582 = vsel %vm1572, %v1568, 1326507024
      %v1583 = vsel %vm1571, %v1565, %v1582
      %v1584 = vsel %vm1570, %v1581, %v1583
      %v1585 = vshll.u32 %v1545, 8
      %v1586 = vmul.u32.u64.compose %v1585, %v1584
      %v1587 = vextract.low.u32 %v1586
      %v1588 = vextract.high.u32 %v1586
      %v1589 = vmul.u32.u64.compose %v1585, %v1580
      %v1590 = vextract.low.u32 %v1589
      %v1591 = vextract.high.u32 %v1589
      %v1592 = vmul.u32 %v1585, %v1576
      %v1593 = vadd.s32 %v1588, %v1590
      %vm1594 = vc.u32 %v1588, %v1590
      %v1595 = vadd.s32 %v1591, 1
      %v1596 = vsel %vm1594, %v1595, %v1591
      %v1597 = vadd.s32 %v1592, %v1596
      %v1598 = vadd.s32 %v1597, 536870912
      %v1599 = vshrl.u32 %v1598, 30
      %v1600 = vshll.u32 %v1599, 30
      %v1601 = vsub.s32 %v1597, %v1600
      %vm1602 = vcmp.lt.s32.totalorder %v1601, 0
      %v1603 = vsub.s32 0, %v1601
      %v1604 = vsel %vm1602, %v1603, %v1601
      %v1605 = vclz %v1604
      %v1606 = vsub.s32 %v1605, 2
      %vm1607 = vcmp.gt.s32.totalorder 0, %v1606
      %v1608 = vsel %vm1607, 0, %v1606
      %v1609 = vsub.s32 32, %v1608
      %v1610 = vshll.u32 %v1601, %v1608
      %v1611 = vshrl.u32 %v1593, %v1609
      %v1612 = vor.u32 %v1610, %v1611
      %v1613 = vsub.s32 4294967266, %v1608
      %v1614 = vadd.s32 %v1613, 127
      %v1615 = vshll.u32 %v1614, 23
      %v1616 = vor.u32 4788187, %v1615
      %v1617 = vand.u32 2147483647, %v1616
      %v1619 = vcvt.s32.f32 %v1612
      %v1620 = vmul.f32 %v1619, %v1617
      %v1621 = vxor.u32 %v1620, 2147483648
      %v1622 = vsel %vm1539, %v1621, %v1620
      %v1623 = vsub.s32 4, %v1599
      %v1624 = vsel %vm1539, %v1623, %v1599
      %v1625 = vsel %vm1538, %v594, %v1622
      %v1626 = vsel %vm1538, 0, %v1624
      %v1627 = vcosq.f32.pop %v1625
      %v1628 = vsinq.f32.pop %v1625
      %vm1629 = vweird.f32 %v594
      %v1630 = vadd.s32 %v1626, 3
      %v1631 = vand.u32 %v1630, 3
      %vm1632 = vcmp.lt.s32.totalorder %v1631, 2
      %vm1633 = vcmp.eq.s32.totalorder %v1631, 0
      %v1634 = vxor.u32 %v1628, 2147483648
      %v1635 = vsel %vm1633, %v1627, %v1634
      %vm1636 = vcmp.eq.s32.totalorder %v1631, 2
      %v1637 = vxor.u32 %v1627, 2147483648
      %v1638 = vsel %vm1636, %v1637, %v1628
      %v1639 = vsel %vm1632, %v1635, %v1638
      %v1640 = vsel %vm1629, nan, %v1639
      %v1641 = vand.u32 2147483647, %v595
      %vm1642 = vcmp.le.f32.partialorder %v1641, 0.7853982
      %vm1643 = vcmp.lt.s32.totalorder %v595, 0
      %v1644 = vand.u32 %v595, 2139095040
      %v1645 = vshrl.u32 %v1644, 23
      %v1646 = vsub.s32 %v1645, 127
      %v1647 = vand.u32 2147483647, %v595
      %v1648 = vand.u32 %v1647, 8388607
      %v1649 = vor.u32 %v1648, 8388608
      %v1650 = vsub.s32 0, %v1649
      %v1651 = vadd.s32 %v1646, 1
      %vm1652 = vcmp.gt.s32.totalorder %v1651, 0
      %v1653 = vsel %vm1652, %v1651, 0
      %v1654 = vshrl.u32 %v1653, 5
      %v1655 = vand.u32 %v1653, 31
      %v1656 = vsub.s32 32, %v1655
      %v1657 = vshrl.u32 683565275, %v1656
      %v1658 = vshll.u32 683565275, %v1655
      %v1659 = vshrl.u32 2475754826, %v1656
      %v1660 = vor.u32 %v1658, %v1659
      %v1661 = vshll.u32 2475754826, %v1655
      %v1662 = vshrl.u32 2131351028, %v1656
      %v1663 = vor.u32 %v1661, %v1662
      %v1664 = vshll.u32 2131351028, %v1655
      %v1665 = vshrl.u32 2102212464, %v1656
      %v1666 = vor.u32 %v1664, %v1665
      %v1667 = vshll.u32 2102212464, %v1655
      %v1668 = vshrl.u32 920167782, %v1656
      %v1669 = vor.u32 %v1667, %v1668
      %v1670 = vshll.u32 920167782, %v1655
      %v1671 = vshrl.u32 1326507024, %v1656
      %v1672 = vor.u32 %v1670, %v1671
      %vm1673 = vcmp.lt.s32.totalorder %v1654, 1
      %vm1674 = vcmp.lt.s32.totalorder %v1654, 2
      %vm1675 = vcmp.lt.s32.totalorder %v1654, 3
      %vm1676 = vcmp.lt.s32.totalorder %v1654, 4
      %v1677 = vsel %vm1673, %v1657, %v1660
      %v1678 = vsel %vm1676, %v1666, 2102212464
      %v1679 = vsel %vm1675, %v1663, %v1678
      %v1680 = vsel %vm1674, %v1677, %v1679
      %v1681 = vsel %vm1673, %v1660, %v1663
      %v1682 = vsel %vm1676, %v1669, 920167782
      %v1683 = vsel %vm1675, %v1666, %v1682
      %v1684 = vsel %vm1674, %v1681, %v1683
      %v1685 = vsel %vm1673, %v1663, %v1666
      %v1686 = vsel %vm1676, %v1672, 1326507024
      %v1687 = vsel %vm1675, %v1669, %v1686
      %v1688 = vsel %vm1674, %v1685, %v1687
      %v1689 = vshll.u32 %v1649, 8
      %v1690 = vmul.u32.u64.compose %v1689, %v1688
      %v1691 = vextract.low.u32 %v1690
      %v1692 = vextract.high.u32 %v1690
      %v1693 = vmul.u32.u64.compose %v1689, %v1684
      %v1694 = vextract.low.u32 %v1693
      %v1695 = vextract.high.u32 %v1693
      %v1696 = vmul.u32 %v1689, %v1680
      %v1697 = vadd.s32 %v1692, %v1694
      %vm1698 = vc.u32 %v1692, %v1694
      %v1699 = vadd.s32 %v1695, 1
      %v1700 = vsel %vm1698, %v1699, %v1695
      %v1701 = vadd.s32 %v1696, %v1700
      %v1702 = vadd.s32 %v1701, 536870912
      %v1703 = vshrl.u32 %v1702, 30
      %v1704 = vshll.u32 %v1703, 30
      %v1705 = vsub.s32 %v1701, %v1704
      %vm1706 = vcmp.lt.s32.totalorder %v1705, 0
      %v1707 = vsub.s32 0, %v1705
      %v1708 = vsel %vm1706, %v1707, %v1705
      %v1709 = vclz %v1708
      %v1710 = vsub.s32 %v1709, 2
      %vm1711 = vcmp.gt.s32.totalorder 0, %v1710
      %v1712 = vsel %vm1711, 0, %v1710
      %v1713 = vsub.s32 32, %v1712
      %v1714 = vshll.u32 %v1705, %v1712
      %v1715 = vshrl.u32 %v1697, %v1713
      %v1716 = vor.u32 %v1714, %v1715
      %v1717 = vsub.s32 4294967266, %v1712
      %v1718 = vadd.s32 %v1717, 127
      %v1719 = vshll.u32 %v1718, 23
      %v1720 = vor.u32 4788187, %v1719
      %v1721 = vand.u32 2147483647, %v1720
      %v1723 = vcvt.s32.f32 %v1716
      %v1724 = vmul.f32 %v1723, %v1721
      %v1725 = vxor.u32 %v1724, 2147483648
      %v1726 = vsel %vm1643, %v1725, %v1724
      %v1727 = vsub.s32 4, %v1703
      %v1728 = vsel %vm1643, %v1727, %v1703
      %v1729 = vsel %vm1642, %v595, %v1726
      %v1730 = vsel %vm1642, 0, %v1728
      %v1731 = vcosq.f32.pop %v1729
      %v1732 = vsinq.f32.pop %v1729
      %vm1733 = vweird.f32 %v595
      %v1734 = vadd.s32 %v1730, 3
      %v1735 = vand.u32 %v1734, 3
      %vm1736 = vcmp.lt.s32.totalorder %v1735, 2
      %vm1737 = vcmp.eq.s32.totalorder %v1735, 0
      %v1738 = vxor.u32 %v1732, 2147483648
      %v1739 = vsel %vm1737, %v1731, %v1738
      %vm1740 = vcmp.eq.s32.totalorder %v1735, 2
      %v1741 = vxor.u32 %v1731, 2147483648
      %v1742 = vsel %vm1740, %v1741, %v1732
      %v1743 = vsel %vm1736, %v1739, %v1742
      %v1744 = vsel %vm1733, nan, %v1743
      %v1745 = vand.u32 2147483647, %v596
      %vm1746 = vcmp.le.f32.partialorder %v1745, 0.7853982
      %vm1747 = vcmp.lt.s32.totalorder %v596, 0
      %v1748 = vand.u32 %v596, 2139095040
      %v1749 = vshrl.u32 %v1748, 23
      %v1750 = vsub.s32 %v1749, 127
      %v1751 = vand.u32 2147483647, %v596
      %v1752 = vand.u32 %v1751, 8388607
      %v1753 = vor.u32 %v1752, 8388608
      %v1754 = vsub.s32 0, %v1753
      %v1755 = vadd.s32 %v1750, 1
      %vm1756 = vcmp.gt.s32.totalorder %v1755, 0
      %v1757 = vsel %vm1756, %v1755, 0
      %v1758 = vshrl.u32 %v1757, 5
      %v1759 = vand.u32 %v1757, 31
      %v1760 = vsub.s32 32, %v1759
      %v1761 = vshrl.u32 683565275, %v1760
      %v1762 = vshll.u32 683565275, %v1759
      %v1763 = vshrl.u32 2475754826, %v1760
      %v1764 = vor.u32 %v1762, %v1763
      %v1765 = vshll.u32 2475754826, %v1759
      %v1766 = vshrl.u32 2131351028, %v1760
      %v1767 = vor.u32 %v1765, %v1766
      %v1768 = vshll.u32 2131351028, %v1759
      %v1769 = vshrl.u32 2102212464, %v1760
      %v1770 = vor.u32 %v1768, %v1769
      %v1771 = vshll.u32 2102212464, %v1759
      %v1772 = vshrl.u32 920167782, %v1760
      %v1773 = vor.u32 %v1771, %v1772
      %v1774 = vshll.u32 920167782, %v1759
      %v1775 = vshrl.u32 1326507024, %v1760
      %v1776 = vor.u32 %v1774, %v1775
      %vm1777 = vcmp.lt.s32.totalorder %v1758, 1
      %vm1778 = vcmp.lt.s32.totalorder %v1758, 2
      %vm1779 = vcmp.lt.s32.totalorder %v1758, 3
      %vm1780 = vcmp.lt.s32.totalorder %v1758, 4
      %v1781 = vsel %vm1777, %v1761, %v1764
      %v1782 = vsel %vm1780, %v1770, 2102212464
      %v1783 = vsel %vm1779, %v1767, %v1782
      %v1784 = vsel %vm1778, %v1781, %v1783
      %v1785 = vsel %vm1777, %v1764, %v1767
      %v1786 = vsel %vm1780, %v1773, 920167782
      %v1787 = vsel %vm1779, %v1770, %v1786
      %v1788 = vsel %vm1778, %v1785, %v1787
      %v1789 = vsel %vm1777, %v1767, %v1770
      %v1790 = vsel %vm1780, %v1776, 1326507024
      %v1791 = vsel %vm1779, %v1773, %v1790
      %v1792 = vsel %vm1778, %v1789, %v1791
      %v1793 = vshll.u32 %v1753, 8
      %v1794 = vmul.u32.u64.compose %v1793, %v1792
      %v1795 = vextract.low.u32 %v1794
      %v1796 = vextract.high.u32 %v1794
      %v1797 = vmul.u32.u64.compose %v1793, %v1788
      %v1798 = vextract.low.u32 %v1797
      %v1799 = vextract.high.u32 %v1797
      %v1800 = vmul.u32 %v1793, %v1784
      %v1801 = vadd.s32 %v1796, %v1798
      %vm1802 = vc.u32 %v1796, %v1798
      %v1803 = vadd.s32 %v1799, 1
      %v1804 = vsel %vm1802, %v1803, %v1799
      %v1805 = vadd.s32 %v1800, %v1804
      %v1806 = vadd.s32 %v1805, 536870912
      %v1807 = vshrl.u32 %v1806, 30
      %v1808 = vshll.u32 %v1807, 30
      %v1809 = vsub.s32 %v1805, %v1808
      %vm1810 = vcmp.lt.s32.totalorder %v1809, 0
      %v1811 = vsub.s32 0, %v1809
      %v1812 = vsel %vm1810, %v1811, %v1809
      %v1813 = vclz %v1812
      %v1814 = vsub.s32 %v1813, 2
      %vm1815 = vcmp.gt.s32.totalorder 0, %v1814
      %v1816 = vsel %vm1815, 0, %v1814
      %v1817 = vsub.s32 32, %v1816
      %v1818 = vshll.u32 %v1809, %v1816
      %v1819 = vshrl.u32 %v1801, %v1817
      %v1820 = vor.u32 %v1818, %v1819
      %v1821 = vsub.s32 4294967266, %v1816
      %v1822 = vadd.s32 %v1821, 127
      %v1823 = vshll.u32 %v1822, 23
      %v1824 = vor.u32 4788187, %v1823
      %v1825 = vand.u32 2147483647, %v1824
      %v1827 = vcvt.s32.f32 %v1820
      %v1828 = vmul.f32 %v1827, %v1825
      %v1829 = vxor.u32 %v1828, 2147483648
      %v1830 = vsel %vm1747, %v1829, %v1828
      %v1831 = vsub.s32 4, %v1807
      %v1832 = vsel %vm1747, %v1831, %v1807
      %v1833 = vsel %vm1746, %v596, %v1830
      %v1834 = vsel %vm1746, 0, %v1832
      %v1835 = vcosq.f32.pop %v1833
      %v1836 = vsinq.f32.pop %v1833
      %vm1837 = vweird.f32 %v596
      %v1838 = vadd.s32 %v1834, 3
      %v1839 = vand.u32 %v1838, 3
      %vm1840 = vcmp.lt.s32.totalorder %v1839, 2
      %vm1841 = vcmp.eq.s32.totalorder %v1839, 0
      %v1842 = vxor.u32 %v1836, 2147483648
      %v1843 = vsel %vm1841, %v1835, %v1842
      %vm1844 = vcmp.eq.s32.totalorder %v1839, 2
      %v1845 = vxor.u32 %v1835, 2147483648
      %v1846 = vsel %vm1844, %v1845, %v1836
      %v1847 = vsel %vm1840, %v1843, %v1846
      %v1848 = vsel %vm1837, nan, %v1847
      %v1849 = vand.u32 2147483647, %v597
      %vm1850 = vcmp.le.f32.partialorder %v1849, 0.7853982
      %vm1851 = vcmp.lt.s32.totalorder %v597, 0
      %v1852 = vand.u32 %v597, 2139095040
      %v1853 = vshrl.u32 %v1852, 23
      %v1854 = vsub.s32 %v1853, 127
      %v1855 = vand.u32 2147483647, %v597
      %v1856 = vand.u32 %v1855, 8388607
      %v1857 = vor.u32 %v1856, 8388608
      %v1858 = vsub.s32 0, %v1857
      %v1859 = vadd.s32 %v1854, 1
      %vm1860 = vcmp.gt.s32.totalorder %v1859, 0
      %v1861 = vsel %vm1860, %v1859, 0
      %v1862 = vshrl.u32 %v1861, 5
      %v1863 = vand.u32 %v1861, 31
      %v1864 = vsub.s32 32, %v1863
      %v1865 = vshrl.u32 683565275, %v1864
      %v1866 = vshll.u32 683565275, %v1863
      %v1867 = vshrl.u32 2475754826, %v1864
      %v1868 = vor.u32 %v1866, %v1867
      %v1869 = vshll.u32 2475754826, %v1863
      %v1870 = vshrl.u32 2131351028, %v1864
      %v1871 = vor.u32 %v1869, %v1870
      %v1872 = vshll.u32 2131351028, %v1863
      %v1873 = vshrl.u32 2102212464, %v1864
      %v1874 = vor.u32 %v1872, %v1873
      %v1875 = vshll.u32 2102212464, %v1863
      %v1876 = vshrl.u32 920167782, %v1864
      %v1877 = vor.u32 %v1875, %v1876
      %v1878 = vshll.u32 920167782, %v1863
      %v1879 = vshrl.u32 1326507024, %v1864
      %v1880 = vor.u32 %v1878, %v1879
      %vm1881 = vcmp.lt.s32.totalorder %v1862, 1
      %vm1882 = vcmp.lt.s32.totalorder %v1862, 2
      %vm1883 = vcmp.lt.s32.totalorder %v1862, 3
      %vm1884 = vcmp.lt.s32.totalorder %v1862, 4
      %v1885 = vsel %vm1881, %v1865, %v1868
      %v1886 = vsel %vm1884, %v1874, 2102212464
      %v1887 = vsel %vm1883, %v1871, %v1886
      %v1888 = vsel %vm1882, %v1885, %v1887
      %v1889 = vsel %vm1881, %v1868, %v1871
      %v1890 = vsel %vm1884, %v1877, 920167782
      %v1891 = vsel %vm1883, %v1874, %v1890
      %v1892 = vsel %vm1882, %v1889, %v1891
      %v1893 = vsel %vm1881, %v1871, %v1874
      %v1894 = vsel %vm1884, %v1880, 1326507024
      %v1895 = vsel %vm1883, %v1877, %v1894
      %v1896 = vsel %vm1882, %v1893, %v1895
      %v1897 = vshll.u32 %v1857, 8
      %v1898 = vmul.u32.u64.compose %v1897, %v1896
      %v1899 = vextract.low.u32 %v1898
      %v1900 = vextract.high.u32 %v1898
      %v1901 = vmul.u32.u64.compose %v1897, %v1892
      %v1902 = vextract.low.u32 %v1901
      %v1903 = vextract.high.u32 %v1901
      %v1904 = vmul.u32 %v1897, %v1888
      %v1905 = vadd.s32 %v1900, %v1902
      %vm1906 = vc.u32 %v1900, %v1902
      %v1907 = vadd.s32 %v1903, 1
      %v1908 = vsel %vm1906, %v1907, %v1903
      %v1909 = vadd.s32 %v1904, %v1908
      %v1910 = vadd.s32 %v1909, 536870912
      %v1911 = vshrl.u32 %v1910, 30
      %v1912 = vshll.u32 %v1911, 30
      %v1913 = vsub.s32 %v1909, %v1912
      %vm1914 = vcmp.lt.s32.totalorder %v1913, 0
      %v1915 = vsub.s32 0, %v1913
      %v1916 = vsel %vm1914, %v1915, %v1913
      %v1917 = vclz %v1916
      %v1918 = vsub.s32 %v1917, 2
      %vm1919 = vcmp.gt.s32.totalorder 0, %v1918
      %v1920 = vsel %vm1919, 0, %v1918
      %v1921 = vsub.s32 32, %v1920
      %v1922 = vshll.u32 %v1913, %v1920
      %v1923 = vshrl.u32 %v1905, %v1921
      %v1924 = vor.u32 %v1922, %v1923
      %v1925 = vsub.s32 4294967266, %v1920
      %v1926 = vadd.s32 %v1925, 127
      %v1927 = vshll.u32 %v1926, 23
      %v1928 = vor.u32 4788187, %v1927
      %v1929 = vand.u32 2147483647, %v1928
      %v1931 = vcvt.s32.f32 %v1924
      %v1932 = vmul.f32 %v1931, %v1929
      %v1933 = vxor.u32 %v1932, 2147483648
      %v1934 = vsel %vm1851, %v1933, %v1932
      %v1935 = vsub.s32 4, %v1911
      %v1936 = vsel %vm1851, %v1935, %v1911
      %v1937 = vsel %vm1850, %v597, %v1934
      %v1938 = vsel %vm1850, 0, %v1936
      %v1939 = vcosq.f32.pop %v1937
      %v1940 = vsinq.f32.pop %v1937
      %vm1941 = vweird.f32 %v597
      %v1942 = vadd.s32 %v1938, 3
      %v1943 = vand.u32 %v1942, 3
      %vm1944 = vcmp.lt.s32.totalorder %v1943, 2
      %vm1945 = vcmp.eq.s32.totalorder %v1943, 0
      %v1946 = vxor.u32 %v1940, 2147483648
      %v1947 = vsel %vm1945, %v1939, %v1946
      %vm1948 = vcmp.eq.s32.totalorder %v1943, 2
      %v1949 = vxor.u32 %v1939, 2147483648
      %v1950 = vsel %vm1948, %v1949, %v1940
      %v1951 = vsel %vm1944, %v1947, %v1950
      %v1952 = vsel %vm1941, nan, %v1951
      %v1953 = vand.u32 2147483647, %v598
      %vm1954 = vcmp.le.f32.partialorder %v1953, 0.7853982
      %vm1955 = vcmp.lt.s32.totalorder %v598, 0
      %v1956 = vand.u32 %v598, 2139095040
      %v1957 = vshrl.u32 %v1956, 23
      %v1958 = vsub.s32 %v1957, 127
      %v1959 = vand.u32 2147483647, %v598
      %v1960 = vand.u32 %v1959, 8388607
      %v1961 = vor.u32 %v1960, 8388608
      %v1962 = vsub.s32 0, %v1961
      %v1963 = vadd.s32 %v1958, 1
      %vm1964 = vcmp.gt.s32.totalorder %v1963, 0
      %v1965 = vsel %vm1964, %v1963, 0
      %v1966 = vshrl.u32 %v1965, 5
      %v1967 = vand.u32 %v1965, 31
      %v1968 = vsub.s32 32, %v1967
      %v1969 = vshrl.u32 683565275, %v1968
      %v1970 = vshll.u32 683565275, %v1967
      %v1971 = vshrl.u32 2475754826, %v1968
      %v1972 = vor.u32 %v1970, %v1971
      %v1973 = vshll.u32 2475754826, %v1967
      %v1974 = vshrl.u32 2131351028, %v1968
      %v1975 = vor.u32 %v1973, %v1974
      %v1976 = vshll.u32 2131351028, %v1967
      %v1977 = vshrl.u32 2102212464, %v1968
      %v1978 = vor.u32 %v1976, %v1977
      %v1979 = vshll.u32 2102212464, %v1967
      %v1980 = vshrl.u32 920167782, %v1968
      %v1981 = vor.u32 %v1979, %v1980
      %v1982 = vshll.u32 920167782, %v1967
      %v1983 = vshrl.u32 1326507024, %v1968
      %v1984 = vor.u32 %v1982, %v1983
      %vm1985 = vcmp.lt.s32.totalorder %v1966, 1
      %vm1986 = vcmp.lt.s32.totalorder %v1966, 2
      %vm1987 = vcmp.lt.s32.totalorder %v1966, 3
      %vm1988 = vcmp.lt.s32.totalorder %v1966, 4
      %v1989 = vsel %vm1985, %v1969, %v1972
      %v1990 = vsel %vm1988, %v1978, 2102212464
      %v1991 = vsel %vm1987, %v1975, %v1990
      %v1992 = vsel %vm1986, %v1989, %v1991
      %v1993 = vsel %vm1985, %v1972, %v1975
      %v1994 = vsel %vm1988, %v1981, 920167782
      %v1995 = vsel %vm1987, %v1978, %v1994
      %v1996 = vsel %vm1986, %v1993, %v1995
      %v1997 = vsel %vm1985, %v1975, %v1978
      %v1998 = vsel %vm1988, %v1984, 1326507024
      %v1999 = vsel %vm1987, %v1981, %v1998
      %v2000 = vsel %vm1986, %v1997, %v1999
      %v2001 = vshll.u32 %v1961, 8
      %v2002 = vmul.u32.u64.compose %v2001, %v2000
      %v2003 = vextract.low.u32 %v2002
      %v2004 = vextract.high.u32 %v2002
      %v2005 = vmul.u32.u64.compose %v2001, %v1996
      %v2006 = vextract.low.u32 %v2005
      %v2007 = vextract.high.u32 %v2005
      %v2008 = vmul.u32 %v2001, %v1992
      %v2009 = vadd.s32 %v2004, %v2006
      %vm2010 = vc.u32 %v2004, %v2006
      %v2011 = vadd.s32 %v2007, 1
      %v2012 = vsel %vm2010, %v2011, %v2007
      %v2013 = vadd.s32 %v2008, %v2012
      %v2014 = vadd.s32 %v2013, 536870912
      %v2015 = vshrl.u32 %v2014, 30
      %v2016 = vshll.u32 %v2015, 30
      %v2017 = vsub.s32 %v2013, %v2016
      %vm2018 = vcmp.lt.s32.totalorder %v2017, 0
      %v2019 = vsub.s32 0, %v2017
      %v2020 = vsel %vm2018, %v2019, %v2017
      %v2021 = vclz %v2020
      %v2022 = vsub.s32 %v2021, 2
      %vm2023 = vcmp.gt.s32.totalorder 0, %v2022
      %v2024 = vsel %vm2023, 0, %v2022
      %v2025 = vsub.s32 32, %v2024
      %v2026 = vshll.u32 %v2017, %v2024
      %v2027 = vshrl.u32 %v2009, %v2025
      %v2028 = vor.u32 %v2026, %v2027
      %v2029 = vsub.s32 4294967266, %v2024
      %v2030 = vadd.s32 %v2029, 127
      %v2031 = vshll.u32 %v2030, 23
      %v2032 = vor.u32 4788187, %v2031
      %v2033 = vand.u32 2147483647, %v2032
      %v2035 = vcvt.s32.f32 %v2028
      %v2036 = vmul.f32 %v2035, %v2033
      %v2037 = vxor.u32 %v2036, 2147483648
      %v2038 = vsel %vm1955, %v2037, %v2036
      %v2039 = vsub.s32 4, %v2015
      %v2040 = vsel %vm1955, %v2039, %v2015
      %v2041 = vsel %vm1954, %v598, %v2038
      %v2042 = vsel %vm1954, 0, %v2040
      %v2043 = vcosq.f32.pop %v2041
      %v2044 = vsinq.f32.pop %v2041
      %vm2045 = vweird.f32 %v598
      %v2046 = vadd.s32 %v2042, 3
      %v2047 = vand.u32 %v2046, 3
      %vm2048 = vcmp.lt.s32.totalorder %v2047, 2
      %vm2049 = vcmp.eq.s32.totalorder %v2047, 0
      %v2050 = vxor.u32 %v2044, 2147483648
      %v2051 = vsel %vm2049, %v2043, %v2050
      %vm2052 = vcmp.eq.s32.totalorder %v2047, 2
      %v2053 = vxor.u32 %v2043, 2147483648
      %v2054 = vsel %vm2052, %v2053, %v2044
      %v2055 = vsel %vm2048, %v2051, %v2054
      %v2056 = vsel %vm2045, nan, %v2055
      %v2057 = vand.u32 2147483647, %v599
      %vm2058 = vcmp.le.f32.partialorder %v2057, 0.7853982
      %vm2059 = vcmp.lt.s32.totalorder %v599, 0
      %v2060 = vand.u32 %v599, 2139095040
      %v2061 = vshrl.u32 %v2060, 23
      %v2062 = vsub.s32 %v2061, 127
      %v2063 = vand.u32 2147483647, %v599
      %v2064 = vand.u32 %v2063, 8388607
      %v2065 = vor.u32 %v2064, 8388608
      %v2066 = vsub.s32 0, %v2065
      %v2067 = vadd.s32 %v2062, 1
      %vm2068 = vcmp.gt.s32.totalorder %v2067, 0
      %v2069 = vsel %vm2068, %v2067, 0
      %v2070 = vshrl.u32 %v2069, 5
      %v2071 = vand.u32 %v2069, 31
      %v2072 = vsub.s32 32, %v2071
      %v2073 = vshrl.u32 683565275, %v2072
      %v2074 = vshll.u32 683565275, %v2071
      %v2075 = vshrl.u32 2475754826, %v2072
      %v2076 = vor.u32 %v2074, %v2075
      %v2077 = vshll.u32 2475754826, %v2071
      %v2078 = vshrl.u32 2131351028, %v2072
      %v2079 = vor.u32 %v2077, %v2078
      %v2080 = vshll.u32 2131351028, %v2071
      %v2081 = vshrl.u32 2102212464, %v2072
      %v2082 = vor.u32 %v2080, %v2081
      %v2083 = vshll.u32 2102212464, %v2071
      %v2084 = vshrl.u32 920167782, %v2072
      %v2085 = vor.u32 %v2083, %v2084
      %v2086 = vshll.u32 920167782, %v2071
      %v2087 = vshrl.u32 1326507024, %v2072
      %v2088 = vor.u32 %v2086, %v2087
      %vm2089 = vcmp.lt.s32.totalorder %v2070, 1
      %vm2090 = vcmp.lt.s32.totalorder %v2070, 2
      %vm2091 = vcmp.lt.s32.totalorder %v2070, 3
      %vm2092 = vcmp.lt.s32.totalorder %v2070, 4
      %v2093 = vsel %vm2089, %v2073, %v2076
      %v2094 = vsel %vm2092, %v2082, 2102212464
      %v2095 = vsel %vm2091, %v2079, %v2094
      %v2096 = vsel %vm2090, %v2093, %v2095
      %v2097 = vsel %vm2089, %v2076, %v2079
      %v2098 = vsel %vm2092, %v2085, 920167782
      %v2099 = vsel %vm2091, %v2082, %v2098
      %v2100 = vsel %vm2090, %v2097, %v2099
      %v2101 = vsel %vm2089, %v2079, %v2082
      %v2102 = vsel %vm2092, %v2088, 1326507024
      %v2103 = vsel %vm2091, %v2085, %v2102
      %v2104 = vsel %vm2090, %v2101, %v2103
      %v2105 = vshll.u32 %v2065, 8
      %v2106 = vmul.u32.u64.compose %v2105, %v2104
      %v2107 = vextract.low.u32 %v2106
      %v2108 = vextract.high.u32 %v2106
      %v2109 = vmul.u32.u64.compose %v2105, %v2100
      %v2110 = vextract.low.u32 %v2109
      %v2111 = vextract.high.u32 %v2109
      %v2112 = vmul.u32 %v2105, %v2096
      %v2113 = vadd.s32 %v2108, %v2110
      %vm2114 = vc.u32 %v2108, %v2110
      %v2115 = vadd.s32 %v2111, 1
      %v2116 = vsel %vm2114, %v2115, %v2111
      %v2117 = vadd.s32 %v2112, %v2116
      %v2118 = vadd.s32 %v2117, 536870912
      %v2119 = vshrl.u32 %v2118, 30
      %v2120 = vshll.u32 %v2119, 30
      %v2121 = vsub.s32 %v2117, %v2120
      %vm2122 = vcmp.lt.s32.totalorder %v2121, 0
      %v2123 = vsub.s32 0, %v2121
      %v2124 = vsel %vm2122, %v2123, %v2121
      %v2125 = vclz %v2124
      %v2126 = vsub.s32 %v2125, 2
      %vm2127 = vcmp.gt.s32.totalorder 0, %v2126
      %v2128 = vsel %vm2127, 0, %v2126
      %v2129 = vsub.s32 32, %v2128
      %v2130 = vshll.u32 %v2121, %v2128
      %v2131 = vshrl.u32 %v2113, %v2129
      %v2132 = vor.u32 %v2130, %v2131
      %v2133 = vsub.s32 4294967266, %v2128
      %v2134 = vadd.s32 %v2133, 127
      %v2135 = vshll.u32 %v2134, 23
      %v2136 = vor.u32 4788187, %v2135
      %v2137 = vand.u32 2147483647, %v2136
      %v2139 = vcvt.s32.f32 %v2132
      %v2140 = vmul.f32 %v2139, %v2137
      %v2141 = vxor.u32 %v2140, 2147483648
      %v2142 = vsel %vm2059, %v2141, %v2140
      %v2143 = vsub.s32 4, %v2119
      %v2144 = vsel %vm2059, %v2143, %v2119
      %v2145 = vsel %vm2058, %v599, %v2142
      %v2146 = vsel %vm2058, 0, %v2144
      %v2147 = vcosq.f32.pop %v2145
      %v2148 = vsinq.f32.pop %v2145
      %vm2149 = vweird.f32 %v599
      %v2150 = vadd.s32 %v2146, 3
      %v2151 = vand.u32 %v2150, 3
      %vm2152 = vcmp.lt.s32.totalorder %v2151, 2
      %vm2153 = vcmp.eq.s32.totalorder %v2151, 0
      %v2154 = vxor.u32 %v2148, 2147483648
      %v2155 = vsel %vm2153, %v2147, %v2154
      %vm2156 = vcmp.eq.s32.totalorder %v2151, 2
      %v2157 = vxor.u32 %v2147, 2147483648
      %v2158 = vsel %vm2156, %v2157, %v2148
      %v2159 = vsel %vm2152, %v2155, %v2158
      %v2160 = vsel %vm2149, nan, %v2159
      %v2161 = vand.u32 2147483647, %v600
      %vm2162 = vcmp.le.f32.partialorder %v2161, 0.7853982
      %vm2163 = vcmp.lt.s32.totalorder %v600, 0
      %v2164 = vand.u32 %v600, 2139095040
      %v2165 = vshrl.u32 %v2164, 23
      %v2166 = vsub.s32 %v2165, 127
      %v2167 = vand.u32 2147483647, %v600
      %v2168 = vand.u32 %v2167, 8388607
      %v2169 = vor.u32 %v2168, 8388608
      %v2170 = vsub.s32 0, %v2169
      %v2171 = vadd.s32 %v2166, 1
      %vm2172 = vcmp.gt.s32.totalorder %v2171, 0
      %v2173 = vsel %vm2172, %v2171, 0
      %v2174 = vshrl.u32 %v2173, 5
      %v2175 = vand.u32 %v2173, 31
      %v2176 = vsub.s32 32, %v2175
      %v2177 = vshrl.u32 683565275, %v2176
      %v2178 = vshll.u32 683565275, %v2175
      %v2179 = vshrl.u32 2475754826, %v2176
      %v2180 = vor.u32 %v2178, %v2179
      %v2181 = vshll.u32 2475754826, %v2175
      %v2182 = vshrl.u32 2131351028, %v2176
      %v2183 = vor.u32 %v2181, %v2182
      %v2184 = vshll.u32 2131351028, %v2175
      %v2185 = vshrl.u32 2102212464, %v2176
      %v2186 = vor.u32 %v2184, %v2185
      %v2187 = vshll.u32 2102212464, %v2175
      %v2188 = vshrl.u32 920167782, %v2176
      %v2189 = vor.u32 %v2187, %v2188
      %v2190 = vshll.u32 920167782, %v2175
      %v2191 = vshrl.u32 1326507024, %v2176
      %v2192 = vor.u32 %v2190, %v2191
      %vm2193 = vcmp.lt.s32.totalorder %v2174, 1
      %vm2194 = vcmp.lt.s32.totalorder %v2174, 2
      %vm2195 = vcmp.lt.s32.totalorder %v2174, 3
      %vm2196 = vcmp.lt.s32.totalorder %v2174, 4
      %v2197 = vsel %vm2193, %v2177, %v2180
      %v2198 = vsel %vm2196, %v2186, 2102212464
      %v2199 = vsel %vm2195, %v2183, %v2198
      %v2200 = vsel %vm2194, %v2197, %v2199
      %v2201 = vsel %vm2193, %v2180, %v2183
      %v2202 = vsel %vm2196, %v2189, 920167782
      %v2203 = vsel %vm2195, %v2186, %v2202
      %v2204 = vsel %vm2194, %v2201, %v2203
      %v2205 = vsel %vm2193, %v2183, %v2186
      %v2206 = vsel %vm2196, %v2192, 1326507024
      %v2207 = vsel %vm2195, %v2189, %v2206
      %v2208 = vsel %vm2194, %v2205, %v2207
      %v2209 = vshll.u32 %v2169, 8
      %v2210 = vmul.u32.u64.compose %v2209, %v2208
      %v2211 = vextract.low.u32 %v2210
      %v2212 = vextract.high.u32 %v2210
      %v2213 = vmul.u32.u64.compose %v2209, %v2204
      %v2214 = vextract.low.u32 %v2213
      %v2215 = vextract.high.u32 %v2213
      %v2216 = vmul.u32 %v2209, %v2200
      %v2217 = vadd.s32 %v2212, %v2214
      %vm2218 = vc.u32 %v2212, %v2214
      %v2219 = vadd.s32 %v2215, 1
      %v2220 = vsel %vm2218, %v2219, %v2215
      %v2221 = vadd.s32 %v2216, %v2220
      %v2222 = vadd.s32 %v2221, 536870912
      %v2223 = vshrl.u32 %v2222, 30
      %v2224 = vshll.u32 %v2223, 30
      %v2225 = vsub.s32 %v2221, %v2224
      %vm2226 = vcmp.lt.s32.totalorder %v2225, 0
      %v2227 = vsub.s32 0, %v2225
      %v2228 = vsel %vm2226, %v2227, %v2225
      %v2229 = vclz %v2228
      %v2230 = vsub.s32 %v2229, 2
      %vm2231 = vcmp.gt.s32.totalorder 0, %v2230
      %v2232 = vsel %vm2231, 0, %v2230
      %v2233 = vsub.s32 32, %v2232
      %v2234 = vshll.u32 %v2225, %v2232
      %v2235 = vshrl.u32 %v2217, %v2233
      %v2236 = vor.u32 %v2234, %v2235
      %v2237 = vsub.s32 4294967266, %v2232
      %v2238 = vadd.s32 %v2237, 127
      %v2239 = vshll.u32 %v2238, 23
      %v2240 = vor.u32 4788187, %v2239
      %v2241 = vand.u32 2147483647, %v2240
      %v2243 = vcvt.s32.f32 %v2236
      %v2244 = vmul.f32 %v2243, %v2241
      %v2245 = vxor.u32 %v2244, 2147483648
      %v2246 = vsel %vm2163, %v2245, %v2244
      %v2247 = vsub.s32 4, %v2223
      %v2248 = vsel %vm2163, %v2247, %v2223
      %v2249 = vsel %vm2162, %v600, %v2246
      %v2250 = vsel %vm2162, 0, %v2248
      %v2251 = vcosq.f32.pop %v2249
      %v2252 = vsinq.f32.pop %v2249
      %vm2253 = vweird.f32 %v600
      %v2254 = vadd.s32 %v2250, 3
      %v2255 = vand.u32 %v2254, 3
      %vm2256 = vcmp.lt.s32.totalorder %v2255, 2
      %vm2257 = vcmp.eq.s32.totalorder %v2255, 0
      %v2258 = vxor.u32 %v2252, 2147483648
      %v2259 = vsel %vm2257, %v2251, %v2258
      %vm2260 = vcmp.eq.s32.totalorder %v2255, 2
      %v2261 = vxor.u32 %v2251, 2147483648
      %v2262 = vsel %vm2260, %v2261, %v2252
      %v2263 = vsel %vm2256, %v2259, %v2262
      %v2264 = vsel %vm2253, nan, %v2263
      %v2265 = vlaneseq
      %v2266 = vand.u32 %v2265, 127
      %v2267 = vadd.s32 %v2266, 128
      %vm2268 = vcmp.lt.s32.totalorder %v2266, 128
      %vm2269 = vcmp.lt.s32.totalorder %v2267, 128
      %v2270 = vsel %vm2268, 1, 0
      %v2271 = vsel %vm2269, 1, 0
      %vm2272 = vcmp.eq.s32.totalorder %v2270, 1
      %vm2273 = vcmp.eq.s32.totalorder %v2271, 1
      %v2274 = vsel %vm2272, %v704, %v585
      %v2275 = vsel %vm2273, %v808, %v586
      %v2276 = vsel %vm2272, %v912, %v587
      %v2277 = vsel %vm2273, %v1016, %v588
      %v2278 = vsel %vm2272, %v1120, %v589
      %v2279 = vsel %vm2273, %v1224, %v590
      %v2280 = vsel %vm2272, %v1328, %v591
      %v2281 = vsel %vm2273, %v1432, %v592
      %v2282 = vsel %vm2272, %v1536, %v593
      %v2283 = vsel %vm2273, %v1640, %v594
      %v2284 = vsel %vm2272, %v1744, %v595
      %v2285 = vsel %vm2273, %v1848, %v596
      %v2286 = vsel %vm2272, %v1952, %v597
      %v2287 = vsel %vm2273, %v2056, %v598
      %v2288 = vsel %vm2272, %v2160, %v599
      %v2289 = vsel %vm2273, %v2264, %v600
      %2290 = vst [vmem:[%s201] sm:$0xff] %v2274
      %2291 = vst.msk [vmem:[%s201 + $0x8] sm:$0xff] %vm266, %v2275
      %2292 = vst [vmem:[%s201 + $0x10] sm:$0xff] %v2276
      %2293 = vst.msk [vmem:[%s201 + $0x18] sm:$0xff] %vm266, %v2277
      %2294 = vst [vmem:[%s201 + $0x20] sm:$0xff] %v2278
      %2295 = vst.msk [vmem:[%s201 + $0x28] sm:$0xff] %vm266, %v2279
      %2296 = vst [vmem:[%s201 + $0x30] sm:$0xff] %v2280
      %2297 = vst.msk [vmem:[%s201 + $0x38] sm:$0xff] %vm266, %v2281
      %2298 = vst [vmem:[%s201 + $0x40] sm:$0xff] %v2282
      %2299 = vst.msk [vmem:[%s201 + $0x48] sm:$0xff] %vm266, %v2283
      %2300 = vst [vmem:[%s201 + $0x50] sm:$0xff] %v2284
      %2301 = vst.msk [vmem:[%s201 + $0x58] sm:$0xff] %vm266, %v2285
      %2302 = vst [vmem:[%s201 + $0x60] sm:$0xff] %v2286
      %2303 = vst.msk [vmem:[%s201 + $0x68] sm:$0xff] %vm266, %v2287
      %2304 = vst [vmem:[%s201 + $0x70] sm:$0xff] %v2288
      %2305 = vst.msk [vmem:[%s201 + $0x78] sm:$0xff] %vm266, %v2289
      %s2306 = smul.u32 8, %s15
      %p2307 = scmp.lt.s32.totalorder %s2306, 15
      %s2308 = scalar_select %p2307, %s2306, 15
      %s2309 = smul.addr %s2308, 2
      %s2310 = smul.addr %s2309, 8
      %s2311 = scalar_lea.vmem %s4, %s2310
      // Predicated region
      $region37: #{tpu_custom_call.1} parent=35 // pred_check
        %p2312 = pneg %p122
      $region38: #{tpu_custom_call.1} parent=35 // pred_check_branch
        %2314 = sbr.rel (%p2312) target = $region40
      $region39: #{tpu_custom_call.1} parent=35 // pred_region
        %s2315 = smul.u32 8, %s15
      $region40: #{tpu_custom_call.1} parent=35 // pred_fallthru
        _
    $region36: #{tpu_custom_call.1} parent=5 // pred_fallthru
      _
    %p2316 = scmp.le.s32.totalorder 2, %s10
    // Predicated region
    $region41: #{tpu_custom_call.1} parent=5 // pred_check
      %p2317 = pneg %p2316
    $region42: #{tpu_custom_call.1} parent=5 // pred_check_branch
      %2319 = sbr.rel (%p2317) target = $region44
    $region43: #{tpu_custom_call.1} parent=5 // pred_region
      %s2320 = ssub.s32 %s10, 2
      // Predicated region
      $region45: #{tpu_custom_call.1} parent=43 // pred_check
        %p2321 = pneg %p128
      $region46: #{tpu_custom_call.1} parent=43 // pred_check_branch
        %2323 = sbr.rel (%p2321) target = $region48
      $region47: #{tpu_custom_call.1} parent=43 // pred_region
        %s2324 = smul.u32 8, %s16
        %p2325 = scmp.lt.s32.totalorder %s2324, 15
        %s2326 = scalar_select %p2325, %s2324, 15
        %s2327 = smul.addr %s2326, 2
        %s2328 = smul.addr %s2327, 8
        %s2329 = scalar_lea.vmem %s4, %s2328
      $region48: #{tpu_custom_call.1} parent=43 // pred_fallthru
        _
    $region44: #{tpu_custom_call.1} parent=5 // pred_fallthru
      _
  $region6: #{tpu_custom_call.1} parent=0 // loop_footer
    %s14 = sadd.s32 1, %s10
  $region7: #{tpu_custom_call.1} parent=0 // loop_footer_branch
    %9 = sbr.rel target = $region3
  $region8: #{tpu_custom_call.1} parent=0 // loop_exit
    _

</llo_original>
